<compile_context>
chip_gen: v5e
topology: v5e:2x2
jax: 0.10.0
libtpu: 0.0.40
codegen_flags: <defaults>
</compile_context>

<pallas_src>
import functools
import math

import jax
import jax.numpy as jnp
from jax.experimental import pallas as pl
from jax.experimental.pallas import tpu as pltpu

_BF16 = jnp.bfloat16
_VMEM_LIMIT = 48 * 1024 * 1024  # leave headroom for v7x's 64 MiB VMEM


def _pick_tile_m(m, target=512):
    """Largest multiple-of-8 divisor of m that is <= target (or m itself)."""
    if m <= target:
        return m
    for t in range(target, 7, -8):
        if m % t == 0:
            return t
    return m


def _row_spec(tm, ncols):
    return pl.BlockSpec((tm, ncols), lambda i: (i, 0))


def _full_spec(shape):
    return pl.BlockSpec(shape, lambda i: tuple(0 for _ in shape))


def _params(n_parallel_axes=1):
    return pltpu.CompilerParams(
        dimension_semantics=("parallel",) * n_parallel_axes,
        vmem_limit_bytes=_VMEM_LIMIT,
    )


# ----------------------------- Pallas kernels ------------------------------ #

def _qkv_proj_kernel(x_ref, w_ref, b_ref, q_ref, k_ref, v_ref, *, inner):
    # x: [tm, H], w: [H, 3*inner] (fused), b: [1, 3*inner]
    x = x_ref[...].astype(_BF16)
    w = w_ref[...].astype(_BF16)
    y = jnp.dot(x, w, preferred_element_type=jnp.float32) + b_ref[...]
    q_ref[...] = y[:, :inner].astype(q_ref.dtype)
    k_ref[...] = y[:, inner:2 * inner].astype(k_ref.dtype)
    v_ref[...] = y[:, 2 * inner:].astype(v_ref.dtype)


def _kv_proj_kernel(x_ref, w_ref, b_ref, k_ref, v_ref, *, inner):
    # x: [tm, H], w: [H, 2*inner] (fused K/V), b: [1, 2*inner]
    x = x_ref[...].astype(_BF16)
    w = w_ref[...].astype(_BF16)
    y = jnp.dot(x, w, preferred_element_type=jnp.float32) + b_ref[...]
    k_ref[...] = y[:, :inner].astype(k_ref.dtype)
    v_ref[...] = y[:, inner:].astype(v_ref.dtype)


def _linear_kernel(x_ref, w_ref, b_ref, o_ref):
    x = x_ref[...].astype(_BF16)
    w = w_ref[...].astype(_BF16)
    y = jnp.dot(x, w, preferred_element_type=jnp.float32) + b_ref[...]
    o_ref[...] = y.astype(o_ref.dtype)


def _mha_kernel(q_ref, k_ref, v_ref, m_ref, o_ref, *, heads_num, head_size, scale):
    # one batch element, all heads: q [Sq, heads*hd], k/v [Skv, heads*hd],
    # m [Sq, Skv] additive mask.  Softmax statistics kept in f32.
    q_all = q_ref[...].astype(_BF16)
    k_all = k_ref[...].astype(_BF16)
    v_all = v_ref[...].astype(_BF16)
    mask = m_ref[...].astype(jnp.float32)
    ctxs = []
    for h in range(heads_num):                      # static unroll over heads
        lo = h * head_size
        hi = lo + head_size
        qh = q_all[:, lo:hi]
        kh = k_all[:, lo:hi]
        vh = v_all[:, lo:hi]
        # contract on head_size without materializing K^T
        s = jax.lax.dot_general(qh, kh, (((1,), (1,)), ((), ())),
                                preferred_element_type=jnp.float32)
        s = s * scale + mask
        s = s - jnp.max(s, axis=-1, keepdims=True)
        p = jnp.exp(s)
        inv = pl.reciprocal(jnp.sum(p, axis=-1, keepdims=True), approx=True)
        p = (p * inv).astype(_BF16)
        ctxs.append(jnp.dot(p, vh, preferred_element_type=jnp.float32))
    # single lane-dense store of all heads
    o_ref[...] = jnp.concatenate(ctxs, axis=-1).astype(o_ref.dtype)
    # TODO(synk): for long sequences convert to a flash-style online-softmax
    # loop over KV tiles instead of materializing the full [Sq, Skv] scores.


def _proj_residual_ln_kernel(x_ref, w_ref, b_ref, r_ref, g_ref, beta_ref, o_ref,
                             *, eps):
    # LayerNorm((x @ W + b) + residual) fused into the matmul epilogue
    x = x_ref[...].astype(_BF16)
    w = w_ref[...].astype(_BF16)
    y = jnp.dot(x, w, preferred_element_type=jnp.float32) + b_ref[...] + r_ref[...]
    mu = jnp.mean(y, axis=-1, keepdims=True)
    var = jnp.mean(jnp.square(y - mu), axis=-1, keepdims=True)
    yn = (y - mu) * jax.lax.rsqrt(var + eps)
    o_ref[...] = (yn * g_ref[...] + beta_ref[...]).astype(o_ref.dtype)


def _ffn_residual_ln_kernel(x_ref, w1_ref, b1_ref, w2_ref, b2_ref, r_ref,
                            g_ref, beta_ref, o_ref, *, eps):
    # LayerNorm(gelu_fast(x@W1+b1)@W2 + b2 + residual), fully fused
    x = x_ref[...].astype(_BF16)
    h = jnp.dot(x, w1_ref[...].astype(_BF16),
                preferred_element_type=jnp.float32) + b1_ref[...]
    h = jax.nn.gelu(h, approximate=True)            # hidden_act = "gelu_fast"
    y = jnp.dot(h.astype(_BF16), w2_ref[...].astype(_BF16),
                preferred_element_type=jnp.float32)
    y = y + b2_ref[...] + r_ref[...]
    mu = jnp.mean(y, axis=-1, keepdims=True)
    var = jnp.mean(jnp.square(y - mu), axis=-1, keepdims=True)
    yn = (y - mu) * jax.lax.rsqrt(var + eps)
    o_ref[...] = (yn * g_ref[...] + beta_ref[...]).astype(o_ref.dtype)
    # TODO(synk): at large feedforward sizes add a K ("arbitrary") grid axis with
    # an f32 VMEM accumulator for the second matmul instead of full-F blocks.


# ------------------------------- wrappers ---------------------------------- #

def qkv_projection(x2d, w_qkv, b_qkv, inner):
    M, K = x2d.shape
    N3 = w_qkv.shape[1]
    tm = _pick_tile_m(M)
    out_sds = jax.ShapeDtypeStruct((M, inner), x2d.dtype)
    return pl.pallas_call(
        functools.partial(_qkv_proj_kernel, inner=inner),
        out_shape=(out_sds, out_sds, out_sds),
        grid=(M // tm,),
        in_specs=[_row_spec(tm, K), _full_spec((K, N3)), _full_spec((1, N3))],
        out_specs=(_row_spec(tm, inner), _row_spec(tm, inner), _row_spec(tm, inner)),
        compiler_params=_params(),
    )(x2d, w_qkv, b_qkv.reshape(1, N3))


def kv_projection(x2d, w_kv, b_kv, inner):
    M, K = x2d.shape
    N2 = w_kv.shape[1]
    tm = _pick_tile_m(M)
    out_sds = jax.ShapeDtypeStruct((M, inner), x2d.dtype)
    return pl.pallas_call(
        functools.partial(_kv_proj_kernel, inner=inner),
        out_shape=(out_sds, out_sds),
        grid=(M // tm,),
        in_specs=[_row_spec(tm, K), _full_spec((K, N2)), _full_spec((1, N2))],
        out_specs=(_row_spec(tm, inner), _row_spec(tm, inner)),
        compiler_params=_params(),
    )(x2d, w_kv, b_kv.reshape(1, N2))


def linear(x2d, w, b):
    M, K = x2d.shape
    N = w.shape[1]
    tm = _pick_tile_m(M)
    return pl.pallas_call(
        _linear_kernel,
        out_shape=jax.ShapeDtypeStruct((M, N), x2d.dtype),
        grid=(M // tm,),
        in_specs=[_row_spec(tm, K), _full_spec((K, N)), _full_spec((1, N))],
        out_specs=_row_spec(tm, N),
        compiler_params=_params(),
    )(x2d, w, b.reshape(1, N))


def attention_core(q, k, v, mask, heads_num, head_size, scale):
    """q: [B, Sq, inner], k/v: [B, Skv, inner], mask: [B, 1, Sq, Skv] additive."""
    B, Sq, inner = q.shape
    Skv = k.shape[1]
    mask3 = mask.reshape(B, Sq, Skv).astype(jnp.float32)
    kernel = functools.partial(_mha_kernel, heads_num=heads_num,
                               head_size=head_size, scale=scale)
    return pl.pallas_call(
        kernel,
        out_shape=jax.ShapeDtypeStruct((B, Sq, inner), q.dtype),
        grid=(B,),
        in_specs=[
            pl.BlockSpec((None, Sq, inner), lambda b: (b, 0, 0)),
            pl.BlockSpec((None, Skv, inner), lambda b: (b, 0, 0)),
            pl.BlockSpec((None, Skv, inner), lambda b: (b, 0, 0)),
            pl.BlockSpec((None, Sq, Skv), lambda b: (b, 0, 0)),
        ],
        out_specs=pl.BlockSpec((None, Sq, inner), lambda b: (b, 0, 0)),
        compiler_params=_params(),
    )(q, k, v, mask3)


def proj_residual_ln(x2d, w, b, residual2d, gamma, beta, eps):
    M, K = x2d.shape
    N = w.shape[1]
    tm = _pick_tile_m(M)
    return pl.pallas_call(
        functools.partial(_proj_residual_ln_kernel, eps=eps),
        out_shape=jax.ShapeDtypeStruct((M, N), x2d.dtype),
        grid=(M // tm,),
        in_specs=[_row_spec(tm, K), _full_spec((K, N)), _full_spec((1, N)),
                  _row_spec(tm, N), _full_spec((1, N)), _full_spec((1, N))],
        out_specs=_row_spec(tm, N),
        compiler_params=_params(),
    )(x2d, w, b.reshape(1, N), residual2d, gamma.reshape(1, N), beta.reshape(1, N))


def ffn_residual_ln(x2d, w1, b1, w2, b2, residual2d, gamma, beta, eps):
    M, H = x2d.shape
    F = w1.shape[1]
    tm = _pick_tile_m(M, target=256)  # larger F blocks live in VMEM; keep M tile modest
    return pl.pallas_call(
        functools.partial(_ffn_residual_ln_kernel, eps=eps),
        out_shape=jax.ShapeDtypeStruct((M, H), x2d.dtype),
        grid=(M // tm,),
        in_specs=[_row_spec(tm, H),
                  _full_spec((H, F)), _full_spec((1, F)),
                  _full_spec((F, H)), _full_spec((1, H)),
                  _row_spec(tm, H), _full_spec((1, H)), _full_spec((1, H))],
        out_specs=_row_spec(tm, H),
        compiler_params=_params(),
    )(x2d, w1, b1.reshape(1, F), w2, b2.reshape(1, H),
      residual2d, gamma.reshape(1, H), beta.reshape(1, H))


# --------------------------- full decoder layer ----------------------------- #

def transformer_decoder_layer(hidden, encoder_hidden, mask_decoder, mask_encoder,
                              params, heads_num, head_size, eps):
    """layernorm_positioning == 'post'; dropouts are identity (eval mode)."""
    B, S, H = hidden.shape
    Se = encoder_hidden.shape[1]
    inner = heads_num * head_size
    scale = 1.0 / math.sqrt(float(head_size))

    # ---- self attention: query = SelfAttn(hidden); query_norm = LN(query + hidden)
    sa = params["self_attn"]
    x2d = hidden.reshape(B * S, H)
    q2d, k2d, v2d = qkv_projection(x2d, sa["wqkv"], sa["bqkv"], inner)
    ctx = attention_core(q2d.reshape(B, S, inner),
                         k2d.reshape(B, S, inner),
                         v2d.reshape(B, S, inner),
                         mask_decoder, heads_num, head_size, scale)
    query_norm = proj_residual_ln(ctx.reshape(B * S, inner), sa["wo"], sa["bo"],
                                  x2d, params["ln1_g"], params["ln1_b"], eps)

    # ---- cross attention: q from query_norm, k/v from encoder_hidden
    ca = params["context_attn"]
    enc2d = encoder_hidden.reshape(B * Se, H)
    cq2d = linear(query_norm, ca["wq"], ca["bq"])
    ck2d, cv2d = kv_projection(enc2d, ca["wkv"], ca["bkv"], inner)
    cctx = attention_core(cq2d.reshape(B, S, inner),
                          ck2d.reshape(B, Se, inner),
                          cv2d.reshape(B, Se, inner),
                          mask_encoder, heads_num, head_size, scale)
    mid_norm = proj_residual_ln(cctx.reshape(B * S, inner), ca["wo"], ca["bo"],
                                query_norm, params["ln2_g"], params["ln2_b"], eps)

    # ---- feed forward: output = LN(FFN(mid_norm) + mid_norm)
    out2d = ffn_residual_ln(mid_norm, params["ff_w1"], params["ff_b1"],
                            params["ff_w2"], params["ff_b2"],
                            mid_norm, params["ln3_g"], params["ln3_b"], eps)
    return out2d.reshape(B, S, H)


# ---------------------------- parameter setup ------------------------------ #

def init_params(key, hidden_size, heads_num, head_size, ff_size):
    inner = heads_num * head_size
    keys = jax.random.split(key, 12)

    def w(k, i, o):
        return jax.random.normal(k, (i, o), jnp.float32) * 0.02

    def zeros(n):
        return jnp.zeros((n,), jnp.float32)

    # self attention: Q/K/V fused along the output dim
    wq, wk, wv = (w(keys[0], hidden_size, inner), w(keys[1], hidden_size, inner),
                  w(keys[2], hidden_size, inner))
    self_attn = {
        "wqkv": jnp.concatenate([wq, wk, wv], axis=1),
        "bqkv": jnp.zeros((3 * inner,), jnp.float32),
        "wo": w(keys[3], inner, hidden_size),
        "bo": zeros(hidden_size),
    }
    # cross attention: K/V fused (they share the encoder input), Q separate
    cwq, cwk, cwv = (w(keys[4], hidden_size, inner), w(keys[5], hidden_size, inner),
                     w(keys[6], hidden_size, inner))
    context_attn = {
        "wq": cwq, "bq": zeros(inner),
        "wkv": jnp.concatenate([cwk, cwv], axis=1),
        "bkv": jnp.zeros((2 * inner,), jnp.float32),
        "wo": w(keys[7], inner, hidden_size),
        "bo": zeros(hidden_size),
    }
    return {
        "self_attn": self_attn,
        "context_attn": context_attn,
        "ff_w1": w(keys[8], hidden_size, ff_size),
        "ff_b1": zeros(ff_size),
        "ff_w2": w(keys[9], ff_size, hidden_size),
        "ff_b2": zeros(hidden_size),
        "ln1_g": jnp.ones((hidden_size,), jnp.float32),
        "ln1_b": zeros(hidden_size),
        "ln2_g": jnp.ones((hidden_size,), jnp.float32),
        "ln2_b": zeros(hidden_size),
        "ln3_g": jnp.ones((hidden_size,), jnp.float32),
        "ln3_b": zeros(hidden_size),
    }


# --------------------------------- main ------------------------------------ #

if __name__ == "__main__":
    B, S, H = 2, 8, 32
    heads_num = 4
    head_size = H // heads_num
    ff_size = 64
    eps = 1e-6

    root = jax.random.PRNGKey(0)
    k_par, k_hid, k_enc = jax.random.split(root, 3)

    params = init_params(k_par, H, heads_num, head_size, ff_size)
    hidden = jax.random.normal(k_hid, (B, S, H), jnp.float32)
    encoder_hidden = jax.random.normal(k_enc, (B, S, H), jnp.float32)

    # Additive masks (same convention tencentpretrain uses upstream of this layer):
    # decoder mask is causal, encoder mask allows everything.
    causal = jnp.tril(jnp.ones((S, S), jnp.float32))
    mask_decoder = jnp.broadcast_to((1.0 - causal) * -10000.0, (B, 1, S, S))
    mask_encoder = jnp.zeros((B, 1, S, S), jnp.float32)

    fwd = jax.jit(functools.partial(transformer_decoder_layer,
                                    heads_num=heads_num, head_size=head_size, eps=eps))
    out = fwd(hidden, encoder_hidden, mask_decoder, mask_encoder, params)
    jax.block_until_ready(out)

    assert out.shape == (B, S, H) and out.dtype == jnp.float32
    assert bool(jnp.all(jnp.isfinite(out)))
    print("KERNEL_OK")
</pallas_src>

<mosaic_0001>
module attributes {stable_mosaic.version = 11 : i64} {
  func.func @_mha_kernel(%arg0: i32, %arg1: memref<1x8x32xf32, #tpu.memory_space<vmem>>, %arg2: memref<1x8x32xf32, #tpu.memory_space<vmem>>, %arg3: memref<1x8x32xf32, #tpu.memory_space<vmem>>, %arg4: memref<1x8x8xf32, #tpu.memory_space<vmem>>, %arg5: memref<1x8x32xf32, #tpu.memory_space<vmem>>) attributes {dimension_semantics = [#tpu.dimension_semantics<parallel>], iteration_bounds = array<i64: 2>, scalar_prefetch = 0 : i64, scratch_operands = 0 : i64, tpu.core_type = #tpu.core_type<tc>, window_params = [{transform_indices = @transform_0, window_bounds = array<i64: 1, 8, 32>}, {transform_indices = @transform_1, window_bounds = array<i64: 1, 8, 32>}, {transform_indices = @transform_2, window_bounds = array<i64: 1, 8, 32>}, {transform_indices = @transform_3, window_bounds = array<i64: 1, 8, 8>}, {transform_indices = @transform_4, window_bounds = array<i64: 1, 8, 32>}]} {
    %c0 = arith.constant 0 : index
    %c0_0 = arith.constant 0 : index
    %c0_1 = arith.constant 0 : index
    %0 = vector.load %arg1[%c0, %c0_0, %c0_1] : memref<1x8x32xf32, #tpu.memory_space<vmem>>, vector<1x8x32xf32>
    %1 = vector.shape_cast %0 : vector<1x8x32xf32> to vector<8x32xf32>
    %2 = arith.truncf %1 : vector<8x32xf32> to vector<8x32xbf16>
    %c0_2 = arith.constant 0 : index
    %c0_3 = arith.constant 0 : index
    %c0_4 = arith.constant 0 : index
    %3 = vector.load %arg2[%c0_2, %c0_3, %c0_4] : memref<1x8x32xf32, #tpu.memory_space<vmem>>, vector<1x8x32xf32>
    %4 = vector.shape_cast %3 : vector<1x8x32xf32> to vector<8x32xf32>
    %5 = arith.truncf %4 : vector<8x32xf32> to vector<8x32xbf16>
    %c0_5 = arith.constant 0 : index
    %c0_6 = arith.constant 0 : index
    %c0_7 = arith.constant 0 : index
    %6 = vector.load %arg3[%c0_5, %c0_6, %c0_7] : memref<1x8x32xf32, #tpu.memory_space<vmem>>, vector<1x8x32xf32>
    %7 = vector.shape_cast %6 : vector<1x8x32xf32> to vector<8x32xf32>
    %8 = arith.truncf %7 : vector<8x32xf32> to vector<8x32xbf16>
    %c0_8 = arith.constant 0 : index
    %c0_9 = arith.constant 0 : index
    %c0_10 = arith.constant 0 : index
    %9 = vector.load %arg4[%c0_8, %c0_9, %c0_10] : memref<1x8x8xf32, #tpu.memory_space<vmem>>, vector<1x8x8xf32>
    %10 = vector.shape_cast %9 : vector<1x8x8xf32> to vector<8x8xf32>
    %11 = vector.extract_strided_slice %2 {offsets = [0, 0], sizes = [8, 8], strides = [1, 1]} : vector<8x32xbf16> to vector<8x8xbf16>
    %12 = vector.extract_strided_slice %5 {offsets = [0, 0], sizes = [8, 8], strides = [1, 1]} : vector<8x32xbf16> to vector<8x8xbf16>
    %13 = vector.extract_strided_slice %8 {offsets = [0, 0], sizes = [8, 8], strides = [1, 1]} : vector<8x32xbf16> to vector<8x8xbf16>
    %cst = arith.constant dense<0.000000e+00> : vector<8x8xf32>
    %14 = tpu.matmul %11, %12, %cst {dimension_numbers = #tpu.dot_dimension_numbers<[1], [1], [0], [0], [0, 0, 1, 0], [], []>} : vector<8x8xbf16>, vector<8x8xbf16>, vector<8x8xf32> -> vector<8x8xf32>
    %cst_11 = arith.constant 0.353553385 : f32
    %15 = vector.broadcast %cst_11 : f32 to vector<8x8xf32>
    %16 = arith.mulf %14, %15 : vector<8x8xf32>
    %17 = arith.addf %16, %10 : vector<8x8xf32>
    %cst_12 = arith.constant dense<0xFF800000> : vector<8xf32>
    %18 = vector.multi_reduction <maximumf>, %17, %cst_12 [1] : vector<8x8xf32> to vector<8xf32>
    %19 = vector.shape_cast %18 : vector<8xf32> to vector<8x1xf32>
    %20 = vector.broadcast %19 : vector<8x1xf32> to vector<8x8xf32>
    %21 = arith.subf %17, %20 : vector<8x8xf32>
    %22 = math.exp %21 : vector<8x8xf32>
    %cst_13 = arith.constant dense<0.000000e+00> : vector<8xf32>
    %23 = vector.multi_reduction <add>, %22, %cst_13 [1] : vector<8x8xf32> to vector<8xf32>
    %24 = vector.shape_cast %23 : vector<8xf32> to vector<8x1xf32>
    %25 = tpu.reciprocal %24 {approx = true} : vector<8x1xf32> -> vector<8x1xf32>
    %26 = vector.broadcast %25 : vector<8x1xf32> to vector<8x8xf32>
    %27 = arith.mulf %22, %26 : vector<8x8xf32>
    %28 = arith.truncf %27 : vector<8x8xf32> to vector<8x8xbf16>
    %cst_14 = arith.constant dense<0.000000e+00> : vector<8x8xf32>
    %29 = tpu.matmul %28, %13, %cst_14 {dimension_numbers = #tpu.dot_dimension_numbers<[1], [0], [0], [1], [0, 0, 1, 1], [], []>} : vector<8x8xbf16>, vector<8x8xbf16>, vector<8x8xf32> -> vector<8x8xf32>
    %30 = vector.extract_strided_slice %2 {offsets = [0, 8], sizes = [8, 8], strides = [1, 1]} : vector<8x32xbf16> to vector<8x8xbf16>
    %31 = vector.extract_strided_slice %5 {offsets = [0, 8], sizes = [8, 8], strides = [1, 1]} : vector<8x32xbf16> to vector<8x8xbf16>
    %32 = vector.extract_strided_slice %8 {offsets = [0, 8], sizes = [8, 8], strides = [1, 1]} : vector<8x32xbf16> to vector<8x8xbf16>
    %cst_15 = arith.constant dense<0.000000e+00> : vector<8x8xf32>
    %33 = tpu.matmul %30, %31, %cst_15 {dimension_numbers = #tpu.dot_dimension_numbers<[1], [1], [0], [0], [0, 0, 1, 0], [], []>} : vector<8x8xbf16>, vector<8x8xbf16>, vector<8x8xf32> -> vector<8x8xf32>
    %cst_16 = arith.constant 0.353553385 : f32
    %34 = vector.broadcast %cst_16 : f32 to vector<8x8xf32>
    %35 = arith.mulf %33, %34 : vector<8x8xf32>
    %36 = arith.addf %35, %10 : vector<8x8xf32>
    %cst_17 = arith.constant dense<0xFF800000> : vector<8xf32>
    %37 = vector.multi_reduction <maximumf>, %36, %cst_17 [1] : vector<8x8xf32> to vector<8xf32>
    %38 = vector.shape_cast %37 : vector<8xf32> to vector<8x1xf32>
    %39 = vector.broadcast %38 : vector<8x1xf32> to vector<8x8xf32>
    %40 = arith.subf %36, %39 : vector<8x8xf32>
    %41 = math.exp %40 : vector<8x8xf32>
    %cst_18 = arith.constant dense<0.000000e+00> : vector<8xf32>
    %42 = vector.multi_reduction <add>, %41, %cst_18 [1] : vector<8x8xf32> to vector<8xf32>
    %43 = vector.shape_cast %42 : vector<8xf32> to vector<8x1xf32>
    %44 = tpu.reciprocal %43 {approx = true} : vector<8x1xf32> -> vector<8x1xf32>
    %45 = vector.broadcast %44 : vector<8x1xf32> to vector<8x8xf32>
    %46 = arith.mulf %41, %45 : vector<8x8xf32>
    %47 = arith.truncf %46 : vector<8x8xf32> to vector<8x8xbf16>
    %cst_19 = arith.constant dense<0.000000e+00> : vector<8x8xf32>
    %48 = tpu.matmul %47, %32, %cst_19 {dimension_numbers = #tpu.dot_dimension_numbers<[1], [0], [0], [1], [0, 0, 1, 1], [], []>} : vector<8x8xbf16>, vector<8x8xbf16>, vector<8x8xf32> -> vector<8x8xf32>
    %49 = vector.extract_strided_slice %2 {offsets = [0, 16], sizes = [8, 8], strides = [1, 1]} : vector<8x32xbf16> to vector<8x8xbf16>
    %50 = vector.extract_strided_slice %5 {offsets = [0, 16], sizes = [8, 8], strides = [1, 1]} : vector<8x32xbf16> to vector<8x8xbf16>
    %51 = vector.extract_strided_slice %8 {offsets = [0, 16], sizes = [8, 8], strides = [1, 1]} : vector<8x32xbf16> to vector<8x8xbf16>
    %cst_20 = arith.constant dense<0.000000e+00> : vector<8x8xf32>
    %52 = tpu.matmul %49, %50, %cst_20 {dimension_numbers = #tpu.dot_dimension_numbers<[1], [1], [0], [0], [0, 0, 1, 0], [], []>} : vector<8x8xbf16>, vector<8x8xbf16>, vector<8x8xf32> -> vector<8x8xf32>
    %cst_21 = arith.constant 0.353553385 : f32
    %53 = vector.broadcast %cst_21 : f32 to vector<8x8xf32>
    %54 = arith.mulf %52, %53 : vector<8x8xf32>
    %55 = arith.addf %54, %10 : vector<8x8xf32>
    %cst_22 = arith.constant dense<0xFF800000> : vector<8xf32>
    %56 = vector.multi_reduction <maximumf>, %55, %cst_22 [1] : vector<8x8xf32> to vector<8xf32>
    %57 = vector.shape_cast %56 : vector<8xf32> to vector<8x1xf32>
    %58 = vector.broadcast %57 : vector<8x1xf32> to vector<8x8xf32>
    %59 = arith.subf %55, %58 : vector<8x8xf32>
    %60 = math.exp %59 : vector<8x8xf32>
    %cst_23 = arith.constant dense<0.000000e+00> : vector<8xf32>
    %61 = vector.multi_reduction <add>, %60, %cst_23 [1] : vector<8x8xf32> to vector<8xf32>
    %62 = vector.shape_cast %61 : vector<8xf32> to vector<8x1xf32>
    %63 = tpu.reciprocal %62 {approx = true} : vector<8x1xf32> -> vector<8x1xf32>
    %64 = vector.broadcast %63 : vector<8x1xf32> to vector<8x8xf32>
    %65 = arith.mulf %60, %64 : vector<8x8xf32>
    %66 = arith.truncf %65 : vector<8x8xf32> to vector<8x8xbf16>
    %cst_24 = arith.constant dense<0.000000e+00> : vector<8x8xf32>
    %67 = tpu.matmul %66, %51, %cst_24 {dimension_numbers = #tpu.dot_dimension_numbers<[1], [0], [0], [1], [0, 0, 1, 1], [], []>} : vector<8x8xbf16>, vector<8x8xbf16>, vector<8x8xf32> -> vector<8x8xf32>
    %68 = vector.extract_strided_slice %2 {offsets = [0, 24], sizes = [8, 8], strides = [1, 1]} : vector<8x32xbf16> to vector<8x8xbf16>
    %69 = vector.extract_strided_slice %5 {offsets = [0, 24], sizes = [8, 8], strides = [1, 1]} : vector<8x32xbf16> to vector<8x8xbf16>
    %70 = vector.extract_strided_slice %8 {offsets = [0, 24], sizes = [8, 8], strides = [1, 1]} : vector<8x32xbf16> to vector<8x8xbf16>
    %cst_25 = arith.constant dense<0.000000e+00> : vector<8x8xf32>
    %71 = tpu.matmul %68, %69, %cst_25 {dimension_numbers = #tpu.dot_dimension_numbers<[1], [1], [0], [0], [0, 0, 1, 0], [], []>} : vector<8x8xbf16>, vector<8x8xbf16>, vector<8x8xf32> -> vector<8x8xf32>
    %cst_26 = arith.constant 0.353553385 : f32
    %72 = vector.broadcast %cst_26 : f32 to vector<8x8xf32>
    %73 = arith.mulf %71, %72 : vector<8x8xf32>
    %74 = arith.addf %73, %10 : vector<8x8xf32>
    %cst_27 = arith.constant dense<0xFF800000> : vector<8xf32>
    %75 = vector.multi_reduction <maximumf>, %74, %cst_27 [1] : vector<8x8xf32> to vector<8xf32>
    %76 = vector.shape_cast %75 : vector<8xf32> to vector<8x1xf32>
    %77 = vector.broadcast %76 : vector<8x1xf32> to vector<8x8xf32>
    %78 = arith.subf %74, %77 : vector<8x8xf32>
    %79 = math.exp %78 : vector<8x8xf32>
    %cst_28 = arith.constant dense<0.000000e+00> : vector<8xf32>
    %80 = vector.multi_reduction <add>, %79, %cst_28 [1] : vector<8x8xf32> to vector<8xf32>
    %81 = vector.shape_cast %80 : vector<8xf32> to vector<8x1xf32>
    %82 = tpu.reciprocal %81 {approx = true} : vector<8x1xf32> -> vector<8x1xf32>
    %83 = vector.broadcast %82 : vector<8x1xf32> to vector<8x8xf32>
    %84 = arith.mulf %79, %83 : vector<8x8xf32>
    %85 = arith.truncf %84 : vector<8x8xf32> to vector<8x8xbf16>
    %cst_29 = arith.constant dense<0.000000e+00> : vector<8x8xf32>
    %86 = tpu.matmul %85, %70, %cst_29 {dimension_numbers = #tpu.dot_dimension_numbers<[1], [0], [0], [1], [0, 0, 1, 1], [], []>} : vector<8x8xbf16>, vector<8x8xbf16>, vector<8x8xf32> -> vector<8x8xf32>
    %87 = tpu.concatenate %29, %48, %67, %86 in 1 : vector<8x8xf32>, vector<8x8xf32>, vector<8x8xf32>, vector<8x8xf32> -> vector<8x32xf32>
    %c0_30 = arith.constant 0 : index
    %c0_31 = arith.constant 0 : index
    %c0_32 = arith.constant 0 : index
    %88 = vector.load %arg5[%c0_30, %c0_31, %c0_32] : memref<1x8x32xf32, #tpu.memory_space<vmem>>, vector<1x8x32xf32>
    %89 = vector.shape_cast %88 : vector<1x8x32xf32> to vector<8x32xf32>
    %90 = vector.shape_cast %87 : vector<8x32xf32> to vector<1x8x32xf32>
    tpu.vector_store %arg5[%c0_30, %c0_31, %c0_32], %90 {strides = array<i32>} : memref<1x8x32xf32, #tpu.memory_space<vmem>>, vector<1x8x32xf32>,
    return
  }
  func.func @transform_0(%arg0: i32) -> (i32, i32, i32) {
    %c0_i32 = arith.constant 0 : i32
    %c0_i32_0 = arith.constant 0 : i32
    %c0_i32_1 = arith.constant 0 : i32
    return %arg0, %c0_i32, %c0_i32_0 : i32, i32, i32
  }
  func.func @transform_1(%arg0: i32) -> (i32, i32, i32) {
    %c0_i32 = arith.constant 0 : i32
    %c0_i32_0 = arith.constant 0 : i32
    %c0_i32_1 = arith.constant 0 : i32
    return %arg0, %c0_i32, %c0_i32_0 : i32, i32, i32
  }
  func.func @transform_2(%arg0: i32) -> (i32, i32, i32) {
    %c0_i32 = arith.constant 0 : i32
    %c0_i32_0 = arith.constant 0 : i32
    %c0_i32_1 = arith.constant 0 : i32
    return %arg0, %c0_i32, %c0_i32_0 : i32, i32, i32
  }
  func.func @transform_3(%arg0: i32) -> (i32, i32, i32) {
    %c0_i32 = arith.constant 0 : i32
    %c0_i32_0 = arith.constant 0 : i32
    %c0_i32_1 = arith.constant 0 : i32
    return %arg0, %c0_i32, %c0_i32_0 : i32, i32, i32
  }
  func.func @transform_4(%arg0: i32) -> (i32, i32, i32) {
    %c0_i32 = arith.constant 0 : i32
    %c0_i32_0 = arith.constant 0 : i32
    %c0_i32_1 = arith.constant 0 : i32
    return %arg0, %c0_i32, %c0_i32_0 : i32, i32, i32
  }
}

module attributes {stable_mosaic.version = 11 : i64} {
  func.func @_proj_residual_ln_kernel(%arg0: i32, %arg1: memref<16x32xf32, #tpu.memory_space<vmem>>, %arg2: memref<32x32xf32, #tpu.memory_space<vmem>>, %arg3: memref<1x32xf32, #tpu.memory_space<vmem>>, %arg4: memref<16x32xf32, #tpu.memory_space<vmem>>, %arg5: memref<1x32xf32, #tpu.memory_space<vmem>>, %arg6: memref<1x32xf32, #tpu.memory_space<vmem>>, %arg7: memref<16x32xf32, #tpu.memory_space<vmem>>) attributes {dimension_semantics = [#tpu.dimension_semantics<parallel>], iteration_bounds = array<i64: 1>, scalar_prefetch = 0 : i64, scratch_operands = 0 : i64, tpu.core_type = #tpu.core_type<tc>, window_params = [{transform_indices = @transform_0, window_bounds = array<i64: 16, 32>}, {pipeline_mode = #tpu.pipeline_mode<synchronous>, transform_indices = @transform_1, window_bounds = array<i64: 32, 32>}, {pipeline_mode = #tpu.pipeline_mode<synchronous>, transform_indices = @transform_2, window_bounds = array<i64: 1, 32>}, {transform_indices = @transform_3, window_bounds = array<i64: 16, 32>}, {pipeline_mode = #tpu.pipeline_mode<synchronous>, transform_indices = @transform_4, window_bounds = array<i64: 1, 32>}, {pipeline_mode = #tpu.pipeline_mode<synchronous>, transform_indices = @transform_5, window_bounds = array<i64: 1, 32>}, {transform_indices = @transform_6, window_bounds = array<i64: 16, 32>}]} {
    %c0 = arith.constant 0 : index
    %c0_0 = arith.constant 0 : index
    %0 = vector.load %arg1[%c0, %c0_0] : memref<16x32xf32, #tpu.memory_space<vmem>>, vector<16x32xf32>
    %1 = arith.truncf %0 : vector<16x32xf32> to vector<16x32xbf16>
    %c0_1 = arith.constant 0 : index
    %c0_2 = arith.constant 0 : index
    %2 = vector.load %arg2[%c0_1, %c0_2] : memref<32x32xf32, #tpu.memory_space<vmem>>, vector<32x32xf32>
    %3 = arith.truncf %2 : vector<32x32xf32> to vector<32x32xbf16>
    %cst = arith.constant dense<0.000000e+00> : vector<16x32xf32>
    %4 = tpu.matmul %1, %3, %cst {dimension_numbers = #tpu.dot_dimension_numbers<[1], [0], [0], [1], [0, 0, 1, 1], [], []>} : vector<16x32xbf16>, vector<32x32xbf16>, vector<16x32xf32> -> vector<16x32xf32>
    %c0_3 = arith.constant 0 : index
    %c0_4 = arith.constant 0 : index
    %5 = vector.load %arg3[%c0_3, %c0_4] : memref<1x32xf32, #tpu.memory_space<vmem>>, vector<1x32xf32>
    %6 = vector.broadcast %5 : vector<1x32xf32> to vector<16x32xf32>
    %7 = arith.addf %4, %6 : vector<16x32xf32>
    %c0_5 = arith.constant 0 : index
    %c0_6 = arith.constant 0 : index
    %8 = vector.load %arg4[%c0_5, %c0_6] : memref<16x32xf32, #tpu.memory_space<vmem>>, vector<16x32xf32>
    %9 = arith.addf %7, %8 : vector<16x32xf32>
    %cst_7 = arith.constant dense<0.000000e+00> : vector<16xf32>
    %10 = vector.multi_reduction <add>, %9, %cst_7 [1] : vector<16x32xf32> to vector<16xf32>
    %11 = vector.shape_cast %10 : vector<16xf32> to vector<16x1xf32>
    %cst_8 = arith.constant 3.200000e+01 : f32
    %12 = vector.broadcast %cst_8 : f32 to vector<16x1xf32>
    %13 = arith.divf %11, %12 : vector<16x1xf32>
    %14 = vector.broadcast %13 : vector<16x1xf32> to vector<16x32xf32>
    %15 = arith.subf %9, %14 : vector<16x32xf32>
    %16 = arith.mulf %15, %15 : vector<16x32xf32>
    %cst_9 = arith.constant dense<0.000000e+00> : vector<16xf32>
    %17 = vector.multi_reduction <add>, %16, %cst_9 [1] : vector<16x32xf32> to vector<16xf32>
    %18 = vector.shape_cast %17 : vector<16xf32> to vector<16x1xf32>
    %cst_10 = arith.constant 3.200000e+01 : f32
    %19 = vector.broadcast %cst_10 : f32 to vector<16x1xf32>
    %20 = arith.divf %18, %19 : vector<16x1xf32>
    %21 = vector.broadcast %13 : vector<16x1xf32> to vector<16x32xf32>
    %22 = arith.subf %9, %21 : vector<16x32xf32>
    %cst_11 = arith.constant 9.99999997E-7 : f32
    %23 = vector.broadcast %cst_11 : f32 to vector<16x1xf32>
    %24 = arith.addf %20, %23 : vector<16x1xf32>
    %25 = math.rsqrt %24 : vector<16x1xf32>
    %26 = vector.broadcast %25 : vector<16x1xf32> to vector<16x32xf32>
    %27 = arith.mulf %22, %26 : vector<16x32xf32>
    %c0_12 = arith.constant 0 : index
    %c0_13 = arith.constant 0 : index
    %28 = vector.load %arg5[%c0_12, %c0_13] : memref<1x32xf32, #tpu.memory_space<vmem>>, vector<1x32xf32>
    %29 = vector.broadcast %28 : vector<1x32xf32> to vector<16x32xf32>
    %30 = arith.mulf %27, %29 : vector<16x32xf32>
    %c0_14 = arith.constant 0 : index
    %c0_15 = arith.constant 0 : index
    %31 = vector.load %arg6[%c0_14, %c0_15] : memref<1x32xf32, #tpu.memory_space<vmem>>, vector<1x32xf32>
    %32 = vector.broadcast %31 : vector<1x32xf32> to vector<16x32xf32>
    %33 = arith.addf %30, %32 : vector<16x32xf32>
    %c0_16 = arith.constant 0 : index
    %c0_17 = arith.constant 0 : index
    %34 = vector.load %arg7[%c0_16, %c0_17] : memref<16x32xf32, #tpu.memory_space<vmem>>, vector<16x32xf32>
    tpu.vector_store %arg7[%c0_16, %c0_17], %33 {strides = array<i32>} : memref<16x32xf32, #tpu.memory_space<vmem>>, vector<16x32xf32>,
    return
  }
  func.func @transform_0(%arg0: i32) -> (i32, i32) {
    %c0_i32 = arith.constant 0 : i32
    %c0_i32_0 = arith.constant 0 : i32
    return %arg0, %c0_i32 : i32, i32
  }
  func.func @transform_1(%arg0: i32) -> (i32, i32) {
    %c0_i32 = arith.constant 0 : i32
    %c0_i32_0 = arith.constant 0 : i32
    %c0_i32_1 = arith.constant 0 : i32
    return %c0_i32, %c0_i32_0 : i32, i32
  }
  func.func @transform_2(%arg0: i32) -> (i32, i32) {
    %c0_i32 = arith.constant 0 : i32
    %c0_i32_0 = arith.constant 0 : i32
    %c0_i32_1 = arith.constant 0 : i32
    return %c0_i32, %c0_i32_0 : i32, i32
  }
  func.func @transform_3(%arg0: i32) -> (i32, i32) {
    %c0_i32 = arith.constant 0 : i32
    %c0_i32_0 = arith.constant 0 : i32
    return %arg0, %c0_i32 : i32, i32
  }
  func.func @transform_4(%arg0: i32) -> (i32, i32) {
    %c0_i32 = arith.constant 0 : i32
    %c0_i32_0 = arith.constant 0 : i32
    %c0_i32_1 = arith.constant 0 : i32
    return %c0_i32, %c0_i32_0 : i32, i32
  }
  func.func @transform_5(%arg0: i32) -> (i32, i32) {
    %c0_i32 = arith.constant 0 : i32
    %c0_i32_0 = arith.constant 0 : i32
    %c0_i32_1 = arith.constant 0 : i32
    return %c0_i32, %c0_i32_0 : i32, i32
  }
  func.func @transform_6(%arg0: i32) -> (i32, i32) {
    %c0_i32 = arith.constant 0 : i32
    %c0_i32_0 = arith.constant 0 : i32
    return %arg0, %c0_i32 : i32, i32
  }
}

module attributes {stable_mosaic.version = 11 : i64} {
  func.func @_kv_proj_kernel(%arg0: i32, %arg1: memref<16x32xf32, #tpu.memory_space<vmem>>, %arg2: memref<32x64xf32, #tpu.memory_space<vmem>>, %arg3: memref<1x64xf32, #tpu.memory_space<vmem>>, %arg4: memref<16x32xf32, #tpu.memory_space<vmem>>, %arg5: memref<16x32xf32, #tpu.memory_space<vmem>>) attributes {dimension_semantics = [#tpu.dimension_semantics<parallel>], iteration_bounds = array<i64: 1>, scalar_prefetch = 0 : i64, scratch_operands = 0 : i64, tpu.core_type = #tpu.core_type<tc>, window_params = [{transform_indices = @transform_0, window_bounds = array<i64: 16, 32>}, {pipeline_mode = #tpu.pipeline_mode<synchronous>, transform_indices = @transform_1, window_bounds = array<i64: 32, 64>}, {pipeline_mode = #tpu.pipeline_mode<synchronous>, transform_indices = @transform_2, window_bounds = array<i64: 1, 64>}, {transform_indices = @transform_3, window_bounds = array<i64: 16, 32>}, {transform_indices = @transform_4, window_bounds = array<i64: 16, 32>}]} {
    %c0 = arith.constant 0 : index
    %c0_0 = arith.constant 0 : index
    %0 = vector.load %arg1[%c0, %c0_0] : memref<16x32xf32, #tpu.memory_space<vmem>>, vector<16x32xf32>
    %1 = arith.truncf %0 : vector<16x32xf32> to vector<16x32xbf16>
    %c0_1 = arith.constant 0 : index
    %c0_2 = arith.constant 0 : index
    %2 = vector.load %arg2[%c0_1, %c0_2] : memref<32x64xf32, #tpu.memory_space<vmem>>, vector<32x64xf32>
    %3 = arith.truncf %2 : vector<32x64xf32> to vector<32x64xbf16>
    %cst = arith.constant dense<0.000000e+00> : vector<16x64xf32>
    %4 = tpu.matmul %1, %3, %cst {dimension_numbers = #tpu.dot_dimension_numbers<[1], [0], [0], [1], [0, 0, 1, 1], [], []>} : vector<16x32xbf16>, vector<32x64xbf16>, vector<16x64xf32> -> vector<16x64xf32>
    %c0_3 = arith.constant 0 : index
    %c0_4 = arith.constant 0 : index
    %5 = vector.load %arg3[%c0_3, %c0_4] : memref<1x64xf32, #tpu.memory_space<vmem>>, vector<1x64xf32>
    %6 = vector.broadcast %5 : vector<1x64xf32> to vector<16x64xf32>
    %7 = arith.addf %4, %6 : vector<16x64xf32>
    %8 = vector.extract_strided_slice %7 {offsets = [0, 0], sizes = [16, 32], strides = [1, 1]} : vector<16x64xf32> to vector<16x32xf32>
    %c0_5 = arith.constant 0 : index
    %c0_6 = arith.constant 0 : index
    %9 = vector.load %arg4[%c0_5, %c0_6] : memref<16x32xf32, #tpu.memory_space<vmem>>, vector<16x32xf32>
    tpu.vector_store %arg4[%c0_5, %c0_6], %8 {strides = array<i32>} : memref<16x32xf32, #tpu.memory_space<vmem>>, vector<16x32xf32>,
    %10 = vector.extract_strided_slice %7 {offsets = [0, 32], sizes = [16, 32], strides = [1, 1]} : vector<16x64xf32> to vector<16x32xf32>
    %c0_7 = arith.constant 0 : index
    %c0_8 = arith.constant 0 : index
    %11 = vector.load %arg5[%c0_7, %c0_8] : memref<16x32xf32, #tpu.memory_space<vmem>>, vector<16x32xf32>
    tpu.vector_store %arg5[%c0_7, %c0_8], %10 {strides = array<i32>} : memref<16x32xf32, #tpu.memory_space<vmem>>, vector<16x32xf32>,
    return
  }
  func.func @transform_0(%arg0: i32) -> (i32, i32) {
    %c0_i32 = arith.constant 0 : i32
    %c0_i32_0 = arith.constant 0 : i32
    return %arg0, %c0_i32 : i32, i32
  }
  func.func @transform_1(%arg0: i32) -> (i32, i32) {
    %c0_i32 = arith.constant 0 : i32
    %c0_i32_0 = arith.constant 0 : i32
    %c0_i32_1 = arith.constant 0 : i32
    return %c0_i32, %c0_i32_0 : i32, i32
  }
  func.func @transform_2(%arg0: i32) -> (i32, i32) {
    %c0_i32 = arith.constant 0 : i32
    %c0_i32_0 = arith.constant 0 : i32
    %c0_i32_1 = arith.constant 0 : i32
    return %c0_i32, %c0_i32_0 : i32, i32
  }
  func.func @transform_3(%arg0: i32) -> (i32, i32) {
    %c0_i32 = arith.constant 0 : i32
    %c0_i32_0 = arith.constant 0 : i32
    return %arg0, %c0_i32 : i32, i32
  }
  func.func @transform_4(%arg0: i32) -> (i32, i32) {
    %c0_i32 = arith.constant 0 : i32
    %c0_i32_0 = arith.constant 0 : i32
    return %arg0, %c0_i32 : i32, i32
  }
}

module attributes {stable_mosaic.version = 11 : i64} {
  func.func @_qkv_proj_kernel(%arg0: i32, %arg1: memref<16x32xf32, #tpu.memory_space<vmem>>, %arg2: memref<32x96xf32, #tpu.memory_space<vmem>>, %arg3: memref<1x96xf32, #tpu.memory_space<vmem>>, %arg4: memref<16x32xf32, #tpu.memory_space<vmem>>, %arg5: memref<16x32xf32, #tpu.memory_space<vmem>>, %arg6: memref<16x32xf32, #tpu.memory_space<vmem>>) attributes {dimension_semantics = [#tpu.dimension_semantics<parallel>], iteration_bounds = array<i64: 1>, scalar_prefetch = 0 : i64, scratch_operands = 0 : i64, tpu.core_type = #tpu.core_type<tc>, window_params = [{transform_indices = @transform_0, window_bounds = array<i64: 16, 32>}, {pipeline_mode = #tpu.pipeline_mode<synchronous>, transform_indices = @transform_1, window_bounds = array<i64: 32, 96>}, {pipeline_mode = #tpu.pipeline_mode<synchronous>, transform_indices = @transform_2, window_bounds = array<i64: 1, 96>}, {transform_indices = @transform_3, window_bounds = array<i64: 16, 32>}, {transform_indices = @transform_4, window_bounds = array<i64: 16, 32>}, {transform_indices = @transform_5, window_bounds = array<i64: 16, 32>}]} {
    %c0 = arith.constant 0 : index
    %c0_0 = arith.constant 0 : index
    %0 = vector.load %arg1[%c0, %c0_0] : memref<16x32xf32, #tpu.memory_space<vmem>>, vector<16x32xf32>
    %1 = arith.truncf %0 : vector<16x32xf32> to vector<16x32xbf16>
    %c0_1 = arith.constant 0 : index
    %c0_2 = arith.constant 0 : index
    %2 = vector.load %arg2[%c0_1, %c0_2] : memref<32x96xf32, #tpu.memory_space<vmem>>, vector<32x96xf32>
    %3 = arith.truncf %2 : vector<32x96xf32> to vector<32x96xbf16>
    %cst = arith.constant dense<0.000000e+00> : vector<16x96xf32>
    %4 = tpu.matmul %1, %3, %cst {dimension_numbers = #tpu.dot_dimension_numbers<[1], [0], [0], [1], [0, 0, 1, 1], [], []>} : vector<16x32xbf16>, vector<32x96xbf16>, vector<16x96xf32> -> vector<16x96xf32>
    %c0_3 = arith.constant 0 : index
    %c0_4 = arith.constant 0 : index
    %5 = vector.load %arg3[%c0_3, %c0_4] : memref<1x96xf32, #tpu.memory_space<vmem>>, vector<1x96xf32>
    %6 = vector.broadcast %5 : vector<1x96xf32> to vector<16x96xf32>
    %7 = arith.addf %4, %6 : vector<16x96xf32>
    %8 = vector.extract_strided_slice %7 {offsets = [0, 0], sizes = [16, 32], strides = [1, 1]} : vector<16x96xf32> to vector<16x32xf32>
    %c0_5 = arith.constant 0 : index
    %c0_6 = arith.constant 0 : index
    %9 = vector.load %arg4[%c0_5, %c0_6] : memref<16x32xf32, #tpu.memory_space<vmem>>, vector<16x32xf32>
    tpu.vector_store %arg4[%c0_5, %c0_6], %8 {strides = array<i32>} : memref<16x32xf32, #tpu.memory_space<vmem>>, vector<16x32xf32>,
    %10 = vector.extract_strided_slice %7 {offsets = [0, 32], sizes = [16, 32], strides = [1, 1]} : vector<16x96xf32> to vector<16x32xf32>
    %c0_7 = arith.constant 0 : index
    %c0_8 = arith.constant 0 : index
    %11 = vector.load %arg5[%c0_7, %c0_8] : memref<16x32xf32, #tpu.memory_space<vmem>>, vector<16x32xf32>
    tpu.vector_store %arg5[%c0_7, %c0_8], %10 {strides = array<i32>} : memref<16x32xf32, #tpu.memory_space<vmem>>, vector<16x32xf32>,
    %12 = vector.extract_strided_slice %7 {offsets = [0, 64], sizes = [16, 32], strides = [1, 1]} : vector<16x96xf32> to vector<16x32xf32>
    %c0_9 = arith.constant 0 : index
    %c0_10 = arith.constant 0 : index
    %13 = vector.load %arg6[%c0_9, %c0_10] : memref<16x32xf32, #tpu.memory_space<vmem>>, vector<16x32xf32>
    tpu.vector_store %arg6[%c0_9, %c0_10], %12 {strides = array<i32>} : memref<16x32xf32, #tpu.memory_space<vmem>>, vector<16x32xf32>,
    return
  }
  func.func @transform_0(%arg0: i32) -> (i32, i32) {
    %c0_i32 = arith.constant 0 : i32
    %c0_i32_0 = arith.constant 0 : i32
    return %arg0, %c0_i32 : i32, i32
  }
  func.func @transform_1(%arg0: i32) -> (i32, i32) {
    %c0_i32 = arith.constant 0 : i32
    %c0_i32_0 = arith.constant 0 : i32
    %c0_i32_1 = arith.constant 0 : i32
    return %c0_i32, %c0_i32_0 : i32, i32
  }
  func.func @transform_2(%arg0: i32) -> (i32, i32) {
    %c0_i32 = arith.constant 0 : i32
    %c0_i32_0 = arith.constant 0 : i32
    %c0_i32_1 = arith.constant 0 : i32
    return %c0_i32, %c0_i32_0 : i32, i32
  }
  func.func @transform_3(%arg0: i32) -> (i32, i32) {
    %c0_i32 = arith.constant 0 : i32
    %c0_i32_0 = arith.constant 0 : i32
    return %arg0, %c0_i32 : i32, i32
  }
  func.func @transform_4(%arg0: i32) -> (i32, i32) {
    %c0_i32 = arith.constant 0 : i32
    %c0_i32_0 = arith.constant 0 : i32
    return %arg0, %c0_i32 : i32, i32
  }
  func.func @transform_5(%arg0: i32) -> (i32, i32) {
    %c0_i32 = arith.constant 0 : i32
    %c0_i32_0 = arith.constant 0 : i32
    return %arg0, %c0_i32 : i32, i32
  }
}

module attributes {stable_mosaic.version = 11 : i64} {
  func.func @_linear_kernel(%arg0: i32, %arg1: memref<16x32xf32, #tpu.memory_space<vmem>>, %arg2: memref<32x32xf32, #tpu.memory_space<vmem>>, %arg3: memref<1x32xf32, #tpu.memory_space<vmem>>, %arg4: memref<16x32xf32, #tpu.memory_space<vmem>>) attributes {dimension_semantics = [#tpu.dimension_semantics<parallel>], iteration_bounds = array<i64: 1>, scalar_prefetch = 0 : i64, scratch_operands = 0 : i64, tpu.core_type = #tpu.core_type<tc>, window_params = [{transform_indices = @transform_0, window_bounds = array<i64: 16, 32>}, {pipeline_mode = #tpu.pipeline_mode<synchronous>, transform_indices = @transform_1, window_bounds = array<i64: 32, 32>}, {pipeline_mode = #tpu.pipeline_mode<synchronous>, transform_indices = @transform_2, window_bounds = array<i64: 1, 32>}, {transform_indices = @transform_3, window_bounds = array<i64: 16, 32>}]} {
    %c0 = arith.constant 0 : index
    %c0_0 = arith.constant 0 : index
    %0 = vector.load %arg1[%c0, %c0_0] : memref<16x32xf32, #tpu.memory_space<vmem>>, vector<16x32xf32>
    %1 = arith.truncf %0 : vector<16x32xf32> to vector<16x32xbf16>
    %c0_1 = arith.constant 0 : index
    %c0_2 = arith.constant 0 : index
    %2 = vector.load %arg2[%c0_1, %c0_2] : memref<32x32xf32, #tpu.memory_space<vmem>>, vector<32x32xf32>
    %3 = arith.truncf %2 : vector<32x32xf32> to vector<32x32xbf16>
    %cst = arith.constant dense<0.000000e+00> : vector<16x32xf32>
    %4 = tpu.matmul %1, %3, %cst {dimension_numbers = #tpu.dot_dimension_numbers<[1], [0], [0], [1], [0, 0, 1, 1], [], []>} : vector<16x32xbf16>, vector<32x32xbf16>, vector<16x32xf32> -> vector<16x32xf32>
    %c0_3 = arith.constant 0 : index
    %c0_4 = arith.constant 0 : index
    %5 = vector.load %arg3[%c0_3, %c0_4] : memref<1x32xf32, #tpu.memory_space<vmem>>, vector<1x32xf32>
    %6 = vector.broadcast %5 : vector<1x32xf32> to vector<16x32xf32>
    %7 = arith.addf %4, %6 : vector<16x32xf32>
    %c0_5 = arith.constant 0 : index
    %c0_6 = arith.constant 0 : index
    %8 = vector.load %arg4[%c0_5, %c0_6] : memref<16x32xf32, #tpu.memory_space<vmem>>, vector<16x32xf32>
    tpu.vector_store %arg4[%c0_5, %c0_6], %7 {strides = array<i32>} : memref<16x32xf32, #tpu.memory_space<vmem>>, vector<16x32xf32>,
    return
  }
  func.func @transform_0(%arg0: i32) -> (i32, i32) {
    %c0_i32 = arith.constant 0 : i32
    %c0_i32_0 = arith.constant 0 : i32
    return %arg0, %c0_i32 : i32, i32
  }
  func.func @transform_1(%arg0: i32) -> (i32, i32) {
    %c0_i32 = arith.constant 0 : i32
    %c0_i32_0 = arith.constant 0 : i32
    %c0_i32_1 = arith.constant 0 : i32
    return %c0_i32, %c0_i32_0 : i32, i32
  }
  func.func @transform_2(%arg0: i32) -> (i32, i32) {
    %c0_i32 = arith.constant 0 : i32
    %c0_i32_0 = arith.constant 0 : i32
    %c0_i32_1 = arith.constant 0 : i32
    return %c0_i32, %c0_i32_0 : i32, i32
  }
  func.func @transform_3(%arg0: i32) -> (i32, i32) {
    %c0_i32 = arith.constant 0 : i32
    %c0_i32_0 = arith.constant 0 : i32
    return %arg0, %c0_i32 : i32, i32
  }
}

module attributes {stable_mosaic.version = 11 : i64} {
  func.func @_proj_residual_ln_kernel(%arg0: i32, %arg1: memref<16x32xf32, #tpu.memory_space<vmem>>, %arg2: memref<32x32xf32, #tpu.memory_space<vmem>>, %arg3: memref<1x32xf32, #tpu.memory_space<vmem>>, %arg4: memref<16x32xf32, #tpu.memory_space<vmem>>, %arg5: memref<1x32xf32, #tpu.memory_space<vmem>>, %arg6: memref<1x32xf32, #tpu.memory_space<vmem>>, %arg7: memref<16x32xf32, #tpu.memory_space<vmem>>) attributes {dimension_semantics = [#tpu.dimension_semantics<parallel>], iteration_bounds = array<i64: 1>, scalar_prefetch = 0 : i64, scratch_operands = 0 : i64, tpu.core_type = #tpu.core_type<tc>, window_params = [{transform_indices = @transform_0, window_bounds = array<i64: 16, 32>}, {pipeline_mode = #tpu.pipeline_mode<synchronous>, transform_indices = @transform_1, window_bounds = array<i64: 32, 32>}, {pipeline_mode = #tpu.pipeline_mode<synchronous>, transform_indices = @transform_2, window_bounds = array<i64: 1, 32>}, {transform_indices = @transform_3, window_bounds = array<i64: 16, 32>}, {pipeline_mode = #tpu.pipeline_mode<synchronous>, transform_indices = @transform_4, window_bounds = array<i64: 1, 32>}, {pipeline_mode = #tpu.pipeline_mode<synchronous>, transform_indices = @transform_5, window_bounds = array<i64: 1, 32>}, {transform_indices = @transform_6, window_bounds = array<i64: 16, 32>}]} {
    %c0 = arith.constant 0 : index
    %c0_0 = arith.constant 0 : index
    %0 = vector.load %arg1[%c0, %c0_0] : memref<16x32xf32, #tpu.memory_space<vmem>>, vector<16x32xf32>
    %1 = arith.truncf %0 : vector<16x32xf32> to vector<16x32xbf16>
    %c0_1 = arith.constant 0 : index
    %c0_2 = arith.constant 0 : index
    %2 = vector.load %arg2[%c0_1, %c0_2] : memref<32x32xf32, #tpu.memory_space<vmem>>, vector<32x32xf32>
    %3 = arith.truncf %2 : vector<32x32xf32> to vector<32x32xbf16>
    %cst = arith.constant dense<0.000000e+00> : vector<16x32xf32>
    %4 = tpu.matmul %1, %3, %cst {dimension_numbers = #tpu.dot_dimension_numbers<[1], [0], [0], [1], [0, 0, 1, 1], [], []>} : vector<16x32xbf16>, vector<32x32xbf16>, vector<16x32xf32> -> vector<16x32xf32>
    %c0_3 = arith.constant 0 : index
    %c0_4 = arith.constant 0 : index
    %5 = vector.load %arg3[%c0_3, %c0_4] : memref<1x32xf32, #tpu.memory_space<vmem>>, vector<1x32xf32>
    %6 = vector.broadcast %5 : vector<1x32xf32> to vector<16x32xf32>
    %7 = arith.addf %4, %6 : vector<16x32xf32>
    %c0_5 = arith.constant 0 : index
    %c0_6 = arith.constant 0 : index
    %8 = vector.load %arg4[%c0_5, %c0_6] : memref<16x32xf32, #tpu.memory_space<vmem>>, vector<16x32xf32>
    %9 = arith.addf %7, %8 : vector<16x32xf32>
    %cst_7 = arith.constant dense<0.000000e+00> : vector<16xf32>
    %10 = vector.multi_reduction <add>, %9, %cst_7 [1] : vector<16x32xf32> to vector<16xf32>
    %11 = vector.shape_cast %10 : vector<16xf32> to vector<16x1xf32>
    %cst_8 = arith.constant 3.200000e+01 : f32
    %12 = vector.broadcast %cst_8 : f32 to vector<16x1xf32>
    %13 = arith.divf %11, %12 : vector<16x1xf32>
    %14 = vector.broadcast %13 : vector<16x1xf32> to vector<16x32xf32>
    %15 = arith.subf %9, %14 : vector<16x32xf32>
    %16 = arith.mulf %15, %15 : vector<16x32xf32>
    %cst_9 = arith.constant dense<0.000000e+00> : vector<16xf32>
    %17 = vector.multi_reduction <add>, %16, %cst_9 [1] : vector<16x32xf32> to vector<16xf32>
    %18 = vector.shape_cast %17 : vector<16xf32> to vector<16x1xf32>
    %cst_10 = arith.constant 3.200000e+01 : f32
    %19 = vector.broadcast %cst_10 : f32 to vector<16x1xf32>
    %20 = arith.divf %18, %19 : vector<16x1xf32>
    %21 = vector.broadcast %13 : vector<16x1xf32> to vector<16x32xf32>
    %22 = arith.subf %9, %21 : vector<16x32xf32>
    %cst_11 = arith.constant 9.99999997E-7 : f32
    %23 = vector.broadcast %cst_11 : f32 to vector<16x1xf32>
    %24 = arith.addf %20, %23 : vector<16x1xf32>
    %25 = math.rsqrt %24 : vector<16x1xf32>
    %26 = vector.broadcast %25 : vector<16x1xf32> to vector<16x32xf32>
    %27 = arith.mulf %22, %26 : vector<16x32xf32>
    %c0_12 = arith.constant 0 : index
    %c0_13 = arith.constant 0 : index
    %28 = vector.load %arg5[%c0_12, %c0_13] : memref<1x32xf32, #tpu.memory_space<vmem>>, vector<1x32xf32>
    %29 = vector.broadcast %28 : vector<1x32xf32> to vector<16x32xf32>
    %30 = arith.mulf %27, %29 : vector<16x32xf32>
    %c0_14 = arith.constant 0 : index
    %c0_15 = arith.constant 0 : index
    %31 = vector.load %arg6[%c0_14, %c0_15] : memref<1x32xf32, #tpu.memory_space<vmem>>, vector<1x32xf32>
    %32 = vector.broadcast %31 : vector<1x32xf32> to vector<16x32xf32>
    %33 = arith.addf %30, %32 : vector<16x32xf32>
    %c0_16 = arith.constant 0 : index
    %c0_17 = arith.constant 0 : index
    %34 = vector.load %arg7[%c0_16, %c0_17] : memref<16x32xf32, #tpu.memory_space<vmem>>, vector<16x32xf32>
    tpu.vector_store %arg7[%c0_16, %c0_17], %33 {strides = array<i32>} : memref<16x32xf32, #tpu.memory_space<vmem>>, vector<16x32xf32>,
    return
  }
  func.func @transform_0(%arg0: i32) -> (i32, i32) {
    %c0_i32 = arith.constant 0 : i32
    %c0_i32_0 = arith.constant 0 : i32
    return %arg0, %c0_i32 : i32, i32
  }
  func.func @transform_1(%arg0: i32) -> (i32, i32) {
    %c0_i32 = arith.constant 0 : i32
    %c0_i32_0 = arith.constant 0 : i32
    %c0_i32_1 = arith.constant 0 : i32
    return %c0_i32, %c0_i32_0 : i32, i32
  }
  func.func @transform_2(%arg0: i32) -> (i32, i32) {
    %c0_i32 = arith.constant 0 : i32
    %c0_i32_0 = arith.constant 0 : i32
    %c0_i32_1 = arith.constant 0 : i32
    return %c0_i32, %c0_i32_0 : i32, i32
  }
  func.func @transform_3(%arg0: i32) -> (i32, i32) {
    %c0_i32 = arith.constant 0 : i32
    %c0_i32_0 = arith.constant 0 : i32
    return %arg0, %c0_i32 : i32, i32
  }
  func.func @transform_4(%arg0: i32) -> (i32, i32) {
    %c0_i32 = arith.constant 0 : i32
    %c0_i32_0 = arith.constant 0 : i32
    %c0_i32_1 = arith.constant 0 : i32
    return %c0_i32, %c0_i32_0 : i32, i32
  }
  func.func @transform_5(%arg0: i32) -> (i32, i32) {
    %c0_i32 = arith.constant 0 : i32
    %c0_i32_0 = arith.constant 0 : i32
    %c0_i32_1 = arith.constant 0 : i32
    return %c0_i32, %c0_i32_0 : i32, i32
  }
  func.func @transform_6(%arg0: i32) -> (i32, i32) {
    %c0_i32 = arith.constant 0 : i32
    %c0_i32_0 = arith.constant 0 : i32
    return %arg0, %c0_i32 : i32, i32
  }
}

module attributes {stable_mosaic.version = 11 : i64} {
  func.func @_ffn_residual_ln_kernel(%arg0: i32, %arg1: memref<16x32xf32, #tpu.memory_space<vmem>>, %arg2: memref<32x64xf32, #tpu.memory_space<vmem>>, %arg3: memref<1x64xf32, #tpu.memory_space<vmem>>, %arg4: memref<64x32xf32, #tpu.memory_space<vmem>>, %arg5: memref<1x32xf32, #tpu.memory_space<vmem>>, %arg6: memref<16x32xf32, #tpu.memory_space<vmem>>, %arg7: memref<1x32xf32, #tpu.memory_space<vmem>>, %arg8: memref<1x32xf32, #tpu.memory_space<vmem>>, %arg9: memref<16x32xf32, #tpu.memory_space<vmem>>) attributes {dimension_semantics = [#tpu.dimension_semantics<parallel>], iteration_bounds = array<i64: 1>, scalar_prefetch = 0 : i64, scratch_operands = 0 : i64, tpu.core_type = #tpu.core_type<tc>, window_params = [{transform_indices = @transform_0, window_bounds = array<i64: 16, 32>}, {pipeline_mode = #tpu.pipeline_mode<synchronous>, transform_indices = @transform_1, window_bounds = array<i64: 32, 64>}, {pipeline_mode = #tpu.pipeline_mode<synchronous>, transform_indices = @transform_2, window_bounds = array<i64: 1, 64>}, {pipeline_mode = #tpu.pipeline_mode<synchronous>, transform_indices = @transform_3, window_bounds = array<i64: 64, 32>}, {pipeline_mode = #tpu.pipeline_mode<synchronous>, transform_indices = @transform_4, window_bounds = array<i64: 1, 32>}, {transform_indices = @transform_5, window_bounds = array<i64: 16, 32>}, {pipeline_mode = #tpu.pipeline_mode<synchronous>, transform_indices = @transform_6, window_bounds = array<i64: 1, 32>}, {pipeline_mode = #tpu.pipeline_mode<synchronous>, transform_indices = @transform_7, window_bounds = array<i64: 1, 32>}, {transform_indices = @transform_8, window_bounds = array<i64: 16, 32>}]} {
    %c0 = arith.constant 0 : index
    %c0_0 = arith.constant 0 : index
    %0 = vector.load %arg1[%c0, %c0_0] : memref<16x32xf32, #tpu.memory_space<vmem>>, vector<16x32xf32>
    %1 = arith.truncf %0 : vector<16x32xf32> to vector<16x32xbf16>
    %c0_1 = arith.constant 0 : index
    %c0_2 = arith.constant 0 : index
    %2 = vector.load %arg2[%c0_1, %c0_2] : memref<32x64xf32, #tpu.memory_space<vmem>>, vector<32x64xf32>
    %3 = arith.truncf %2 : vector<32x64xf32> to vector<32x64xbf16>
    %cst = arith.constant dense<0.000000e+00> : vector<16x64xf32>
    %4 = tpu.matmul %1, %3, %cst {dimension_numbers = #tpu.dot_dimension_numbers<[1], [0], [0], [1], [0, 0, 1, 1], [], []>} : vector<16x32xbf16>, vector<32x64xbf16>, vector<16x64xf32> -> vector<16x64xf32>
    %c0_3 = arith.constant 0 : index
    %c0_4 = arith.constant 0 : index
    %5 = vector.load %arg3[%c0_3, %c0_4] : memref<1x64xf32, #tpu.memory_space<vmem>>, vector<1x64xf32>
    %6 = vector.broadcast %5 : vector<1x64xf32> to vector<16x64xf32>
    %7 = arith.addf %4, %6 : vector<16x64xf32>
    %8 = arith.mulf %7, %7 : vector<16x64xf32>
    %9 = arith.mulf %7, %8 : vector<16x64xf32>
    %cst_5 = arith.constant 4.471500e-02 : f32
    %10 = vector.broadcast %cst_5 : f32 to vector<16x64xf32>
    %11 = arith.mulf %10, %9 : vector<16x64xf32>
    %12 = arith.addf %7, %11 : vector<16x64xf32>
    %cst_6 = arith.constant 0.797884583 : f32
    %13 = vector.broadcast %cst_6 : f32 to vector<16x64xf32>
    %14 = arith.mulf %13, %12 : vector<16x64xf32>
    %15 = math.tanh %14 : vector<16x64xf32>
    %cst_7 = arith.constant 1.000000e+00 : f32
    %16 = vector.broadcast %cst_7 : f32 to vector<16x64xf32>
    %17 = arith.addf %16, %15 : vector<16x64xf32>
    %cst_8 = arith.constant 5.000000e-01 : f32
    %18 = vector.broadcast %cst_8 : f32 to vector<16x64xf32>
    %19 = arith.mulf %18, %17 : vector<16x64xf32>
    %20 = arith.mulf %7, %19 : vector<16x64xf32>
    %21 = arith.truncf %20 : vector<16x64xf32> to vector<16x64xbf16>
    %c0_9 = arith.constant 0 : index
    %c0_10 = arith.constant 0 : index
    %22 = vector.load %arg4[%c0_9, %c0_10] : memref<64x32xf32, #tpu.memory_space<vmem>>, vector<64x32xf32>
    %23 = arith.truncf %22 : vector<64x32xf32> to vector<64x32xbf16>
    %cst_11 = arith.constant dense<0.000000e+00> : vector<16x32xf32>
    %24 = tpu.matmul %21, %23, %cst_11 {dimension_numbers = #tpu.dot_dimension_numbers<[1], [0], [0], [1], [0, 0, 1, 1], [], []>} : vector<16x64xbf16>, vector<64x32xbf16>, vector<16x32xf32> -> vector<16x32xf32>
    %c0_12 = arith.constant 0 : index
    %c0_13 = arith.constant 0 : index
    %25 = vector.load %arg5[%c0_12, %c0_13] : memref<1x32xf32, #tpu.memory_space<vmem>>, vector<1x32xf32>
    %26 = vector.broadcast %25 : vector<1x32xf32> to vector<16x32xf32>
    %27 = arith.addf %24, %26 : vector<16x32xf32>
    %c0_14 = arith.constant 0 : index
    %c0_15 = arith.constant 0 : index
    %28 = vector.load %arg6[%c0_14, %c0_15] : memref<16x32xf32, #tpu.memory_space<vmem>>, vector<16x32xf32>
    %29 = arith.addf %27, %28 : vector<16x32xf32>
    %cst_16 = arith.constant dense<0.000000e+00> : vector<16xf32>
    %30 = vector.multi_reduction <add>, %29, %cst_16 [1] : vector<16x32xf32> to vector<16xf32>
    %31 = vector.shape_cast %30 : vector<16xf32> to vector<16x1xf32>
    %cst_17 = arith.constant 3.200000e+01 : f32
    %32 = vector.broadcast %cst_17 : f32 to vector<16x1xf32>
    %33 = arith.divf %31, %32 : vector<16x1xf32>
    %34 = vector.broadcast %33 : vector<16x1xf32> to vector<16x32xf32>
    %35 = arith.subf %29, %34 : vector<16x32xf32>
    %36 = arith.mulf %35, %35 : vector<16x32xf32>
    %cst_18 = arith.constant dense<0.000000e+00> : vector<16xf32>
    %37 = vector.multi_reduction <add>, %36, %cst_18 [1] : vector<16x32xf32> to vector<16xf32>
    %38 = vector.shape_cast %37 : vector<16xf32> to vector<16x1xf32>
    %cst_19 = arith.constant 3.200000e+01 : f32
    %39 = vector.broadcast %cst_19 : f32 to vector<16x1xf32>
    %40 = arith.divf %38, %39 : vector<16x1xf32>
    %41 = vector.broadcast %33 : vector<16x1xf32> to vector<16x32xf32>
    %42 = arith.subf %29, %41 : vector<16x32xf32>
    %cst_20 = arith.constant 9.99999997E-7 : f32
    %43 = vector.broadcast %cst_20 : f32 to vector<16x1xf32>
    %44 = arith.addf %40, %43 : vector<16x1xf32>
    %45 = math.rsqrt %44 : vector<16x1xf32>
    %46 = vector.broadcast %45 : vector<16x1xf32> to vector<16x32xf32>
    %47 = arith.mulf %42, %46 : vector<16x32xf32>
    %c0_21 = arith.constant 0 : index
    %c0_22 = arith.constant 0 : index
    %48 = vector.load %arg7[%c0_21, %c0_22] : memref<1x32xf32, #tpu.memory_space<vmem>>, vector<1x32xf32>
    %49 = vector.broadcast %48 : vector<1x32xf32> to vector<16x32xf32>
    %50 = arith.mulf %47, %49 : vector<16x32xf32>
    %c0_23 = arith.constant 0 : index
    %c0_24 = arith.constant 0 : index
    %51 = vector.load %arg8[%c0_23, %c0_24] : memref<1x32xf32, #tpu.memory_space<vmem>>, vector<1x32xf32>
    %52 = vector.broadcast %51 : vector<1x32xf32> to vector<16x32xf32>
    %53 = arith.addf %50, %52 : vector<16x32xf32>
    %c0_25 = arith.constant 0 : index
    %c0_26 = arith.constant 0 : index
    %54 = vector.load %arg9[%c0_25, %c0_26] : memref<16x32xf32, #tpu.memory_space<vmem>>, vector<16x32xf32>
    tpu.vector_store %arg9[%c0_25, %c0_26], %53 {strides = array<i32>} : memref<16x32xf32, #tpu.memory_space<vmem>>, vector<16x32xf32>,
    return
  }
  func.func @transform_0(%arg0: i32) -> (i32, i32) {
    %c0_i32 = arith.constant 0 : i32
    %c0_i32_0 = arith.constant 0 : i32
    return %arg0, %c0_i32 : i32, i32
  }
  func.func @transform_1(%arg0: i32) -> (i32, i32) {
    %c0_i32 = arith.constant 0 : i32
    %c0_i32_0 = arith.constant 0 : i32
    %c0_i32_1 = arith.constant 0 : i32
    return %c0_i32, %c0_i32_0 : i32, i32
  }
  func.func @transform_2(%arg0: i32) -> (i32, i32) {
    %c0_i32 = arith.constant 0 : i32
    %c0_i32_0 = arith.constant 0 : i32
    %c0_i32_1 = arith.constant 0 : i32
    return %c0_i32, %c0_i32_0 : i32, i32
  }
  func.func @transform_3(%arg0: i32) -> (i32, i32) {
    %c0_i32 = arith.constant 0 : i32
    %c0_i32_0 = arith.constant 0 : i32
    %c0_i32_1 = arith.constant 0 : i32
    return %c0_i32, %c0_i32_0 : i32, i32
  }
  func.func @transform_4(%arg0: i32) -> (i32, i32) {
    %c0_i32 = arith.constant 0 : i32
    %c0_i32_0 = arith.constant 0 : i32
    %c0_i32_1 = arith.constant 0 : i32
    return %c0_i32, %c0_i32_0 : i32, i32
  }
  func.func @transform_5(%arg0: i32) -> (i32, i32) {
    %c0_i32 = arith.constant 0 : i32
    %c0_i32_0 = arith.constant 0 : i32
    return %arg0, %c0_i32 : i32, i32
  }
  func.func @transform_6(%arg0: i32) -> (i32, i32) {
    %c0_i32 = arith.constant 0 : i32
    %c0_i32_0 = arith.constant 0 : i32
    %c0_i32_1 = arith.constant 0 : i32
    return %c0_i32, %c0_i32_0 : i32, i32
  }
  func.func @transform_7(%arg0: i32) -> (i32, i32) {
    %c0_i32 = arith.constant 0 : i32
    %c0_i32_0 = arith.constant 0 : i32
    %c0_i32_1 = arith.constant 0 : i32
    return %c0_i32, %c0_i32_0 : i32, i32
  }
  func.func @transform_8(%arg0: i32) -> (i32, i32) {
    %c0_i32 = arith.constant 0 : i32
    %c0_i32_0 = arith.constant 0 : i32
    return %arg0, %c0_i32 : i32, i32
  }
}

</mosaic_0001>

<llo_original>
// kernel: transformer_decoder_layer.8
$region0: #{transformer_decoder_layer.8}
  #allocation0 [shape = 'u32[]', space=smem, size = 0x4, offset = 0x4, fixed_abs, tag = 'smem constant byte address 0x4 - core index']
  #allocation1 [shape = 'u32[72,128]{1,0:T(1,128)}', space=vmem, size = 0x9000, scoped, tag = 'internal scratch']
  %s0 = inlined_call_operand.hbm [shape: f32[16,32], index: 0, kind: input, shape index: {}]
  %s1 = inlined_call_operand.hbm [shape: f32[32,96], index: 1, kind: input, shape index: {}]
  %s2 = inlined_call_operand.vmem [shape: f32[1,96], index: 2, kind: input, shape index: {}]
  %s3 = inlined_call_operand.vmem [shape: f32[16,32], index: 3, kind: output, shape index: {0}]
  %s4 = inlined_call_operand.vmem [shape: f32[16,32], index: 4, kind: output, shape index: {1}]
  %s5 = inlined_call_operand.vmem [shape: f32[16,32], index: 5, kind: output, shape index: {2}]
  %6 = xla_tuple %s3, %s4, %s5
  %s7 = sld [smem:[#allocation0]]
  $region46: #{transformer_decoder_layer.8} parent=0
    _
  %s9 = ssub.s32 1, %s7
  %s10 = scalar_select 0, %s9, %s7
  $region1: #{transformer_decoder_layer.8} parent=0
    #allocation2 [shape = 'u8[8192]{0}', space=vmem, size = 0x2000, scoped, tag = 'input window, operand 0, single buffered']
    #allocation3 [shape = 's32[1]{0}', space=sflag, size = 0x4, scoped, tag = 'scoped memory for transformer_decoder_layer.8']
    #allocation4 [shape = 'u8[16384]{0}', space=vmem, size = 0x4000, scoped, tag = 'input window, operand 1, single buffered']
    #allocation5 [shape = 's32[1]{0}', space=sflag, size = 0x4, scoped, tag = 'scoped memory for transformer_decoder_layer.8']
    %11 = vsyncpa [#allocation3], 0
    %12 = vsyncpa [#allocation5], 0
    // Predicated region
    $region2: #{transformer_decoder_layer.8} parent=1 // pred_check
      _
    $region3: #{transformer_decoder_layer.8} parent=1 // pred_check_branch
      %14 = sbr.rel (0) target = $region5
    $region4: #{transformer_decoder_layer.8} parent=1 // pred_region
      %16 = vsyncadd [#allocation3], 0
      %s17 = sshll.u32 %s0, 4
      %s18 = int_to_ptr.hbm [resolvable:$true] %s17
      %s19 = sshll.u32 [#allocation2], 4
      %s20 = int_to_ptr.vmem [resolvable:$true] %s19
      %25 = dma.hbm_to_vmem [thread:$0]  %s18, 256, %s20, [#allocation3], 128, 128, 8
    $region5: #{transformer_decoder_layer.8} parent=1 // pred_fallthru
      _
    // Predicated region
    $region6: #{transformer_decoder_layer.8} parent=1 // pred_check
      _
    $region7: #{transformer_decoder_layer.8} parent=1 // pred_check_branch
      %27 = sbr.rel (0) target = $region9
    $region8: #{transformer_decoder_layer.8} parent=1 // pred_region
      %29 = vsyncadd [#allocation5], 0
      %s30 = sshll.u32 %s1, 4
      %s31 = int_to_ptr.hbm [resolvable:$true] %s30
      %s32 = sshll.u32 [#allocation4], 4
      %s33 = int_to_ptr.vmem [resolvable:$true] %s32
      %38 = dma.hbm_to_vmem [thread:$0]  %s31, 512, %s33, [#allocation5], 128, 128, 8
    $region9: #{transformer_decoder_layer.8} parent=1 // pred_fallthru
      _
    // Predicated region
    $region10: #{transformer_decoder_layer.8} parent=1 // pred_check
      _
    $region11: #{transformer_decoder_layer.8} parent=1 // pred_check_branch
      %40 = sbr.rel (0) target = $region13
    $region12: #{transformer_decoder_layer.8} parent=1 // pred_region
      _
    $region13: #{transformer_decoder_layer.8} parent=1 // pred_fallthru
      _
    // Predicated region
    $region14: #{transformer_decoder_layer.8} parent=1 // pred_check
      _
    $region15: #{transformer_decoder_layer.8} parent=1 // pred_check_branch
      %42 = sbr.rel (0) target = $region17
    $region16: #{transformer_decoder_layer.8} parent=1 // pred_region
      %44 = dma.done [#allocation3], 256
    $region17: #{transformer_decoder_layer.8} parent=1 // pred_fallthru
      _
    // Predicated region
    $region18: #{transformer_decoder_layer.8} parent=1 // pred_check
      _
    $region19: #{transformer_decoder_layer.8} parent=1 // pred_check_branch
      %46 = sbr.rel (0) target = $region21
    $region20: #{transformer_decoder_layer.8} parent=1 // pred_region
      %48 = dma.done [#allocation5], 512
    $region21: #{transformer_decoder_layer.8} parent=1 // pred_fallthru
      _
    %v50 = vld [vmem:[#allocation2] sm:$0xff]
    %v51 = vld [vmem:[#allocation2 + $0x8] sm:$0xff]
    %v52 = vpack.c.bf16 %v51, %v50
    %v53 = vld [vmem:[#allocation4] sm:$0xff]
    %v54 = vld [vmem:[#allocation4 + $0x8] sm:$0xff]
    %v55 = vld [vmem:[#allocation4 + $0x10] sm:$0xff]
    %v56 = vld [vmem:[#allocation4 + $0x18] sm:$0xff]
    %v57 = vpack.c.bf16 %v54, %v53
    %v58 = vpack.c.bf16 %v56, %v55
    %v59 = vld [vmem:[%s2] sm:$0x1]
    %v61 = vperm.slane %v59, 0
    %vm63 = vcmask 261120
    %v65 = vsel %vm63, %v52, 0
    %67 = vmatpush.bf16.msra.mxu0 0
    %68 = vmatpush.bf16.msra.mxu0 0
    %69 = vmatpush.bf16.msra.mxu0 0
    %70 = vmatpush.bf16.msra.mxu0 0
    %71 = vmatpush.bf16.msra.mxu0 0
    %72 = vmatpush.bf16.msra.mxu0 0
    %73 = vmatpush.bf16.msra.mxu0 %v58
    %74 = vmatpush.bf16.msra.mxu0 %v57
    %75 = vmatmul.bf16.gmra.mxu0 %v65
    %v76 = vpop.f32.mrf.mxu0
    %v77 = vadd.f32 %v61, %v76
    %v78 = vpop.f32.mrf.mxu0
    %v79 = vadd.f32 %v61, %v78
    %80 = vdwg.mxu0
    %81 = vst.msk [vmem:[%s3] sm:$0xff] %vm63, %v77
    %82 = vst.msk [vmem:[%s3 + $0x8] sm:$0xff] %vm63, %v79
    %85 = vrot.lane.b32.xlu0 %v77, 96
    %v86 = vpop.permute.xlu0 %85
    %87 = vrot.lane.b32.xlu0 %v79, 96
    %v88 = vpop.permute.xlu0 %87
    %91 = vst.msk [vmem:[%s4] sm:$0xff] %vm63, %v86
    %92 = vst.msk [vmem:[%s4 + $0x8] sm:$0xff] %vm63, %v88
    %93 = vrot.lane.b32.xlu0 %v77, 64
    %v94 = vpop.permute.xlu0 %93
    %95 = vrot.lane.b32.xlu0 %v79, 64
    %v96 = vpop.permute.xlu0 %95
    %99 = vst.msk [vmem:[%s5] sm:$0xff] %vm63, %v94
    %100 = vst.msk [vmem:[%s5 + $0x8] sm:$0xff] %vm63, %v96
    // Predicated region
    $region22: #{transformer_decoder_layer.8} parent=1 // pred_check
      _
    $region23: #{transformer_decoder_layer.8} parent=1 // pred_check_branch
      %102 = sbr.rel (0) target = $region25
    $region24: #{transformer_decoder_layer.8} parent=1 // pred_region
      _
    $region25: #{transformer_decoder_layer.8} parent=1 // pred_fallthru
      _
    // Predicated region
    $region26: #{transformer_decoder_layer.8} parent=1 // pred_check
      _
    $region27: #{transformer_decoder_layer.8} parent=1 // pred_check_branch
      %104 = sbr.rel (0) target = $region29
    $region28: #{transformer_decoder_layer.8} parent=1 // pred_region
      _
    $region29: #{transformer_decoder_layer.8} parent=1 // pred_fallthru
      _
    // Predicated region
    $region30: #{transformer_decoder_layer.8} parent=1 // pred_check
      _
    $region31: #{transformer_decoder_layer.8} parent=1 // pred_check_branch
      %106 = sbr.rel (0) target = $region33
    $region32: #{transformer_decoder_layer.8} parent=1 // pred_region
      _
    $region33: #{transformer_decoder_layer.8} parent=1 // pred_fallthru
      _
    // Predicated region
    $region34: #{transformer_decoder_layer.8} parent=1 // pred_check
      _
    $region35: #{transformer_decoder_layer.8} parent=1 // pred_check_branch
      %108 = sbr.rel (0) target = $region37
    $region36: #{transformer_decoder_layer.8} parent=1 // pred_region
      _
    $region37: #{transformer_decoder_layer.8} parent=1 // pred_fallthru
      _
    // Predicated region
    $region38: #{transformer_decoder_layer.8} parent=1 // pred_check
      _
    $region39: #{transformer_decoder_layer.8} parent=1 // pred_check_branch
      %110 = sbr.rel (0) target = $region41
    $region40: #{transformer_decoder_layer.8} parent=1 // pred_region
      _
    $region41: #{transformer_decoder_layer.8} parent=1 // pred_fallthru
      _
    // Predicated region
    $region42: #{transformer_decoder_layer.8} parent=1 // pred_check
      _
    $region43: #{transformer_decoder_layer.8} parent=1 // pred_check_branch
      %112 = sbr.rel (0) target = $region45
    $region44: #{transformer_decoder_layer.8} parent=1 // pred_region
      _
    $region45: #{transformer_decoder_layer.8} parent=1 // pred_fallthru
      _
    %113 = vsyncpa [#allocation3], 1
    %114 = vsyncpa [#allocation5], 1

// kernel: transformer_decoder_layer.12
$region0: #{transformer_decoder_layer.12}
  #allocation0 [shape = 'u32[]', space=smem, size = 0x4, offset = 0x4, fixed_abs, tag = 'smem constant byte address 0x4 - core index']
  #allocation1 [shape = 'u32[72,128]{1,0:T(1,128)}', space=vmem, size = 0x9000, scoped, tag = 'internal scratch']
  %s0 = inlined_call_operand.hbm [shape: f32[16,32], index: 0, kind: input, shape index: {}]
  %s1 = inlined_call_operand.hbm [shape: f32[32,64], index: 1, kind: input, shape index: {}]
  %s2 = inlined_call_operand.hbm [shape: f32[1,64], index: 2, kind: input, shape index: {}]
  %s3 = inlined_call_operand.vmem [shape: f32[16,32], index: 3, kind: output, shape index: {0}]
  %s4 = inlined_call_operand.vmem [shape: f32[16,32], index: 4, kind: output, shape index: {1}]
  %5 = xla_tuple %s3, %s4
  %s6 = sld [smem:[#allocation0]]
  $region42: #{transformer_decoder_layer.12} parent=0
    _
  %s8 = ssub.s32 1, %s6
  %s9 = scalar_select 0, %s8, %s6
  $region1: #{transformer_decoder_layer.12} parent=0
    #allocation2 [shape = 'u8[8192]{0}', space=vmem, size = 0x2000, scoped, tag = 'input window, operand 0, single buffered']
    #allocation3 [shape = 's32[1]{0}', space=sflag, size = 0x4, scoped, tag = 'scoped memory for transformer_decoder_layer.12']
    #allocation4 [shape = 'u8[16384]{0}', space=vmem, size = 0x4000, scoped, tag = 'input window, operand 1, single buffered']
    #allocation5 [shape = 's32[1]{0}', space=sflag, size = 0x4, scoped, tag = 'scoped memory for transformer_decoder_layer.12']
    #allocation6 [shape = 'u8[512]{0}', space=vmem, size = 0x400, scoped, tag = 'input window, operand 2, single buffered']
    %10 = vsyncpa [#allocation3], 0
    %11 = vsyncpa [#allocation5], 0
    // Predicated region
    $region2: #{transformer_decoder_layer.12} parent=1 // pred_check
      _
    $region3: #{transformer_decoder_layer.12} parent=1 // pred_check_branch
      %13 = sbr.rel (0) target = $region5
    $region4: #{transformer_decoder_layer.12} parent=1 // pred_region
      %15 = vsyncadd [#allocation3], 0
      %s16 = sshll.u32 %s0, 4
      %s17 = int_to_ptr.hbm [resolvable:$true] %s16
      %s18 = sshll.u32 [#allocation2], 4
      %s19 = int_to_ptr.vmem [resolvable:$true] %s18
      %24 = dma.hbm_to_vmem [thread:$0]  %s17, 256, %s19, [#allocation3], 128, 128, 8
    $region5: #{transformer_decoder_layer.12} parent=1 // pred_fallthru
      _
    // Predicated region
    $region6: #{transformer_decoder_layer.12} parent=1 // pred_check
      _
    $region7: #{transformer_decoder_layer.12} parent=1 // pred_check_branch
      %26 = sbr.rel (0) target = $region9
    $region8: #{transformer_decoder_layer.12} parent=1 // pred_region
      %28 = vsyncadd [#allocation5], 0
      %s29 = sshll.u32 %s1, 4
      %s30 = int_to_ptr.hbm [resolvable:$true] %s29
      %s31 = sshll.u32 [#allocation4], 4
      %s32 = int_to_ptr.vmem [resolvable:$true] %s31
      %37 = dma.hbm_to_vmem [thread:$0]  %s30, 512, %s32, [#allocation5], 128, 128, 8
    $region9: #{transformer_decoder_layer.12} parent=1 // pred_fallthru
      _
    // Predicated region
    $region10: #{transformer_decoder_layer.12} parent=1 // pred_check
      _
    $region11: #{transformer_decoder_layer.12} parent=1 // pred_check_branch
      %39 = sbr.rel (0) target = $region13
    $region12: #{transformer_decoder_layer.12} parent=1 // pred_region
      %41 = vsyncadd [#allocation5], 0
      %s43 = sshll.u32 %s2, 4
      %s44 = int_to_ptr.hbm [resolvable:$true] %s43
      %s45 = sshll.u32 [#allocation6], 4
      %s46 = int_to_ptr.vmem [resolvable:$true] %s45
      %48 = dma.hbm_to_vmem [thread:$0]  %s44, 16, %s46, [#allocation5]
    $region13: #{transformer_decoder_layer.12} parent=1 // pred_fallthru
      _
    // Predicated region
    $region14: #{transformer_decoder_layer.12} parent=1 // pred_check
      _
    $region15: #{transformer_decoder_layer.12} parent=1 // pred_check_branch
      %50 = sbr.rel (0) target = $region17
    $region16: #{transformer_decoder_layer.12} parent=1 // pred_region
      %52 = dma.done [#allocation3], 256
    $region17: #{transformer_decoder_layer.12} parent=1 // pred_fallthru
      _
    // Predicated region
    $region18: #{transformer_decoder_layer.12} parent=1 // pred_check
      _
    $region19: #{transformer_decoder_layer.12} parent=1 // pred_check_branch
      %54 = sbr.rel (0) target = $region21
    $region20: #{transformer_decoder_layer.12} parent=1 // pred_region
      %56 = dma.done [#allocation5], 512
    $region21: #{transformer_decoder_layer.12} parent=1 // pred_fallthru
      _
    // Predicated region
    $region22: #{transformer_decoder_layer.12} parent=1 // pred_check
      _
    $region23: #{transformer_decoder_layer.12} parent=1 // pred_check_branch
      %58 = sbr.rel (0) target = $region25
    $region24: #{transformer_decoder_layer.12} parent=1 // pred_region
      %60 = dma.done [#allocation5], 16
    $region25: #{transformer_decoder_layer.12} parent=1 // pred_fallthru
      _
    %v62 = vld [vmem:[#allocation2] sm:$0xff]
    %v63 = vld [vmem:[#allocation2 + $0x8] sm:$0xff]
    %v64 = vpack.c.bf16 %v63, %v62
    %v65 = vld [vmem:[#allocation4] sm:$0xff]
    %v66 = vld [vmem:[#allocation4 + $0x8] sm:$0xff]
    %v67 = vld [vmem:[#allocation4 + $0x10] sm:$0xff]
    %v68 = vld [vmem:[#allocation4 + $0x18] sm:$0xff]
    %v69 = vpack.c.bf16 %v66, %v65
    %v70 = vpack.c.bf16 %v68, %v67
    %v71 = vld [vmem:[#allocation6] sm:$0x1]
    %v73 = vperm.slane %v71, 0
    %vm75 = vcmask 261120
    %v77 = vsel %vm75, %v64, 0
    %79 = vmatpush.bf16.msra.mxu0 0
    %80 = vmatpush.bf16.msra.mxu0 0
    %81 = vmatpush.bf16.msra.mxu0 0
    %82 = vmatpush.bf16.msra.mxu0 0
    %83 = vmatpush.bf16.msra.mxu0 0
    %84 = vmatpush.bf16.msra.mxu0 0
    %85 = vmatpush.bf16.msra.mxu0 %v70
    %86 = vmatpush.bf16.msra.mxu0 %v69
    %87 = vmatmul.bf16.gmra.mxu0 %v77
    %v88 = vpop.f32.mrf.mxu0
    %v89 = vadd.f32 %v73, %v88
    %v90 = vpop.f32.mrf.mxu0
    %v91 = vadd.f32 %v73, %v90
    %92 = vdwg.mxu0
    %93 = vst.msk [vmem:[%s3] sm:$0xff] %vm75, %v89
    %94 = vst.msk [vmem:[%s3 + $0x8] sm:$0xff] %vm75, %v91
    %97 = vrot.lane.b32.xlu0 %v89, 96
    %v98 = vpop.permute.xlu0 %97
    %99 = vrot.lane.b32.xlu0 %v91, 96
    %v100 = vpop.permute.xlu0 %99
    %103 = vst.msk [vmem:[%s4] sm:$0xff] %vm75, %v98
    %104 = vst.msk [vmem:[%s4 + $0x8] sm:$0xff] %vm75, %v100
    // Predicated region
    $region26: #{transformer_decoder_layer.12} parent=1 // pred_check
      _
    $region27: #{transformer_decoder_layer.12} parent=1 // pred_check_branch
      %106 = sbr.rel (0) target = $region29
    $region28: #{transformer_decoder_layer.12} parent=1 // pred_region
      _
    $region29: #{transformer_decoder_layer.12} parent=1 // pred_fallthru
      _
    // Predicated region
    $region30: #{transformer_decoder_layer.12} parent=1 // pred_check
      _
    $region31: #{transformer_decoder_layer.12} parent=1 // pred_check_branch
      %108 = sbr.rel (0) target = $region33
    $region32: #{transformer_decoder_layer.12} parent=1 // pred_region
      _
    $region33: #{transformer_decoder_layer.12} parent=1 // pred_fallthru
      _
    // Predicated region
    $region34: #{transformer_decoder_layer.12} parent=1 // pred_check
      _
    $region35: #{transformer_decoder_layer.12} parent=1 // pred_check_branch
      %110 = sbr.rel (0) target = $region37
    $region36: #{transformer_decoder_layer.12} parent=1 // pred_region
      _
    $region37: #{transformer_decoder_layer.12} parent=1 // pred_fallthru
      _
    // Predicated region
    $region38: #{transformer_decoder_layer.12} parent=1 // pred_check
      _
    $region39: #{transformer_decoder_layer.12} parent=1 // pred_check_branch
      %112 = sbr.rel (0) target = $region41
    $region40: #{transformer_decoder_layer.12} parent=1 // pred_region
      _
    $region41: #{transformer_decoder_layer.12} parent=1 // pred_fallthru
      _
    %113 = vsyncpa [#allocation3], 1
    %114 = vsyncpa [#allocation5], 1

// kernel: transformer_decoder_layer.10
$region0: #{transformer_decoder_layer.10}
  #allocation0 [shape = 'u32[]', space=smem, size = 0x4, offset = 0x4, fixed_abs, tag = 'smem constant byte address 0x4 - core index']
  #allocation1 [shape = 'u32[72,128]{1,0:T(1,128)}', space=vmem, size = 0x9000, scoped, tag = 'internal scratch']
  %s0 = inlined_call_operand.vmem [shape: f32[16,32], index: 0, kind: input, shape index: {}]
  %s1 = inlined_call_operand.hbm [shape: f32[32,32], index: 1, kind: input, shape index: {}]
  %s2 = inlined_call_operand.vmem [shape: f32[1,32], index: 2, kind: input, shape index: {}]
  %s3 = inlined_call_operand.hbm [shape: f32[16,32], index: 3, kind: input, shape index: {}]
  %s4 = inlined_call_operand.vmem [shape: f32[1,32], index: 4, kind: input, shape index: {}]
  %s5 = inlined_call_operand.vmem [shape: f32[1,32], index: 5, kind: input, shape index: {}]
  %s6 = inlined_call_operand.vmem [shape: f32[16,32], index: 6, kind: output, shape index: {}]
  %s7 = sld [smem:[#allocation0]]
  $region42: #{transformer_decoder_layer.10} parent=0
    _
  %s9 = ssub.s32 1, %s7
  %s10 = scalar_select 0, %s9, %s7
  $region1: #{transformer_decoder_layer.10} parent=0
    #allocation2 [shape = 'u8[16384]{0}', space=vmem, size = 0x4000, scoped, tag = 'input window, operand 1, single buffered']
    #allocation3 [shape = 's32[1]{0}', space=sflag, size = 0x4, scoped, tag = 'scoped memory for transformer_decoder_layer.10']
    #allocation4 [shape = 'u8[8192]{0}', space=vmem, size = 0x2000, scoped, tag = 'input window, operand 3, single buffered']
    #allocation5 [shape = 's32[1]{0}', space=sflag, size = 0x4, scoped, tag = 'scoped memory for transformer_decoder_layer.10']
    %11 = vsyncpa [#allocation3], 0
    %12 = vsyncpa [#allocation5], 0
    // Predicated region
    $region2: #{transformer_decoder_layer.10} parent=1 // pred_check
      _
    $region3: #{transformer_decoder_layer.10} parent=1 // pred_check_branch
      %14 = sbr.rel (0) target = $region5
    $region4: #{transformer_decoder_layer.10} parent=1 // pred_region
      _
    $region5: #{transformer_decoder_layer.10} parent=1 // pred_fallthru
      _
    // Predicated region
    $region6: #{transformer_decoder_layer.10} parent=1 // pred_check
      _
    $region7: #{transformer_decoder_layer.10} parent=1 // pred_check_branch
      %16 = sbr.rel (0) target = $region9
    $region8: #{transformer_decoder_layer.10} parent=1 // pred_region
      %18 = vsyncadd [#allocation3], 0
      %s19 = sshll.u32 %s1, 4
      %s20 = int_to_ptr.hbm [resolvable:$true] %s19
      %s21 = sshll.u32 [#allocation2], 4
      %s22 = int_to_ptr.vmem [resolvable:$true] %s21
      %27 = dma.hbm_to_vmem [thread:$0]  %s20, 512, %s22, [#allocation3], 128, 128, 8
    $region9: #{transformer_decoder_layer.10} parent=1 // pred_fallthru
      _
    // Predicated region
    $region10: #{transformer_decoder_layer.10} parent=1 // pred_check
      _
    $region11: #{transformer_decoder_layer.10} parent=1 // pred_check_branch
      %29 = sbr.rel (0) target = $region13
    $region12: #{transformer_decoder_layer.10} parent=1 // pred_region
      _
    $region13: #{transformer_decoder_layer.10} parent=1 // pred_fallthru
      _
    // Predicated region
    $region14: #{transformer_decoder_layer.10} parent=1 // pred_check
      _
    $region15: #{transformer_decoder_layer.10} parent=1 // pred_check_branch
      %31 = sbr.rel (0) target = $region17
    $region16: #{transformer_decoder_layer.10} parent=1 // pred_region
      %33 = vsyncadd [#allocation5], 0
      %s34 = sshll.u32 %s3, 4
      %s35 = int_to_ptr.hbm [resolvable:$true] %s34
      %s36 = sshll.u32 [#allocation4], 4
      %s37 = int_to_ptr.vmem [resolvable:$true] %s36
      %42 = dma.hbm_to_vmem [thread:$0]  %s35, 256, %s37, [#allocation5], 128, 128, 8
    $region17: #{transformer_decoder_layer.10} parent=1 // pred_fallthru
      _
    // Predicated region
    $region18: #{transformer_decoder_layer.10} parent=1 // pred_check
      _
    $region19: #{transformer_decoder_layer.10} parent=1 // pred_check_branch
      %44 = sbr.rel (0) target = $region21
    $region20: #{transformer_decoder_layer.10} parent=1 // pred_region
      _
    $region21: #{transformer_decoder_layer.10} parent=1 // pred_fallthru
      _
    // Predicated region
    $region22: #{transformer_decoder_layer.10} parent=1 // pred_check
      _
    $region23: #{transformer_decoder_layer.10} parent=1 // pred_check_branch
      %46 = sbr.rel (0) target = $region25
    $region24: #{transformer_decoder_layer.10} parent=1 // pred_region
      _
    $region25: #{transformer_decoder_layer.10} parent=1 // pred_fallthru
      _
    // Predicated region
    $region26: #{transformer_decoder_layer.10} parent=1 // pred_check
      _
    $region27: #{transformer_decoder_layer.10} parent=1 // pred_check_branch
      %48 = sbr.rel (0) target = $region29
    $region28: #{transformer_decoder_layer.10} parent=1 // pred_region
      %50 = dma.done [#allocation3], 512
    $region29: #{transformer_decoder_layer.10} parent=1 // pred_fallthru
      _
    // Predicated region
    $region30: #{transformer_decoder_layer.10} parent=1 // pred_check
      _
    $region31: #{transformer_decoder_layer.10} parent=1 // pred_check_branch
      %52 = sbr.rel (0) target = $region33
    $region32: #{transformer_decoder_layer.10} parent=1 // pred_region
      %54 = dma.done [#allocation5], 256
    $region33: #{transformer_decoder_layer.10} parent=1 // pred_fallthru
      _
    %v56 = vld [vmem:[%s0] sm:$0xff]
    %v57 = vld [vmem:[%s0 + $0x8] sm:$0xff]
    %v58 = vpack.c.bf16 %v57, %v56
    %v59 = vld [vmem:[#allocation2] sm:$0xff]
    %v60 = vld [vmem:[#allocation2 + $0x8] sm:$0xff]
    %v61 = vld [vmem:[#allocation2 + $0x10] sm:$0xff]
    %v62 = vld [vmem:[#allocation2 + $0x18] sm:$0xff]
    %v63 = vpack.c.bf16 %v60, %v59
    %v64 = vpack.c.bf16 %v62, %v61
    %v65 = vld [vmem:[%s2] sm:$0x1]
    %v67 = vperm.slane %v65, 0
    %vm69 = vcmask 261120
    %v71 = vsel %vm69, %v58, 0
    %73 = vmatpush.bf16.msra.mxu0 0
    %74 = vmatpush.bf16.msra.mxu0 0
    %75 = vmatpush.bf16.msra.mxu0 0
    %76 = vmatpush.bf16.msra.mxu0 0
    %77 = vmatpush.bf16.msra.mxu0 0
    %78 = vmatpush.bf16.msra.mxu0 0
    %79 = vmatpush.bf16.msra.mxu0 %v64
    %80 = vmatpush.bf16.msra.mxu0 %v63
    %81 = vmatmul.bf16.gmra.mxu0 %v71
    %v82 = vpop.f32.mrf.mxu0
    %v83 = vadd.f32 %v67, %v82
    %v84 = vpop.f32.mrf.mxu0
    %v85 = vadd.f32 %v67, %v84
    %86 = vdwg.mxu0
    %v87 = vld [vmem:[#allocation4] sm:$0xff]
    %v88 = vld [vmem:[#allocation4 + $0x8] sm:$0xff]
    %v89 = vadd.f32 %v83, %v87
    %v90 = vadd.f32 %v85, %v88
    %v91 = vsel %vm69, %v89, 0.0
    %92 = vadd.xlane.f32.xlu0 %v91
    %v93 = vpop.xlane.xlu0 %92
    %v94 = vsel %vm69, %v90, 0.0
    %95 = vadd.xlane.f32.xlu0 %v94
    %v96 = vpop.xlane.xlu0 %95
    %v97 = vrcp.pop 32.0
    %v98 = vmul.f32 32.0, %v97
    %v99 = vsub.f32 1.0, %v98
    %v100 = vmul.f32 %v97, %v99
    %v101 = vadd.f32 %v97, %v100
    %vm102 = vweird.f32 %v97
    %v103 = vsel %vm102, %v97, %v101
    %v104 = vmul.f32 %v93, %v103
    %v105 = vmul.f32 %v96, %v103
    %v106 = vsub.f32 %v89, %v104
    %v107 = vsub.f32 %v90, %v105
    %v108 = vmul.f32 %v106, %v106
    %v109 = vmul.f32 %v107, %v107
    %v110 = vsel %vm69, %v108, 0.0
    %111 = vadd.xlane.f32.xlu0 %v110
    %v112 = vpop.xlane.xlu0 %111
    %v113 = vsel %vm69, %v109, 0.0
    %114 = vadd.xlane.f32.xlu0 %v113
    %v115 = vpop.xlane.xlu0 %114
    %v116 = vmul.f32 %v112, %v103
    %v117 = vmul.f32 %v115, %v103
    %v118 = vadd.f32 %v116, 1e-06
    %v119 = vadd.f32 %v117, 1e-06
    %v120 = vrsqrt.pop %v118
    %v121 = vmul.f32 %v120, %v118
    %v122 = vmul.f32 %v121, %v120
    %v123 = vmul.f32 0.5, %v122
    %v124 = vsub.f32 1.5, %v123
    %v125 = vmul.f32 %v120, %v124
    %vm126 = vweird.f32 %v118
    %vm127 = vweird.f32 %v120
    %vm128 = vmor %vm126, %vm127
    %v129 = vsel %vm128, %v120, %v125
    %v130 = vrsqrt.pop %v119
    %v131 = vmul.f32 %v130, %v119
    %v132 = vmul.f32 %v131, %v130
    %v133 = vmul.f32 0.5, %v132
    %v134 = vsub.f32 1.5, %v133
    %v135 = vmul.f32 %v130, %v134
    %vm136 = vweird.f32 %v119
    %vm137 = vweird.f32 %v130
    %vm138 = vmor %vm136, %vm137
    %v139 = vsel %vm138, %v130, %v135
    %v140 = vmul.f32 %v106, %v129
    %v141 = vmul.f32 %v107, %v139
    %v142 = vld [vmem:[%s4] sm:$0x1]
    %v144 = vperm.slane %v142, 0
    %v146 = vmul.f32 %v140, %v144
    %v147 = vmul.f32 %v141, %v144
    %v148 = vld [vmem:[%s5] sm:$0x1]
    %v150 = vperm.slane %v148, 0
    %v152 = vadd.f32 %v146, %v150
    %v153 = vadd.f32 %v147, %v150
    %154 = vst.msk [vmem:[%s6] sm:$0xff] %vm69, %v152
    %155 = vst.msk [vmem:[%s6 + $0x8] sm:$0xff] %vm69, %v153
    // Predicated region
    $region34: #{transformer_decoder_layer.10} parent=1 // pred_check
      _
    $region35: #{transformer_decoder_layer.10} parent=1 // pred_check_branch
      %157 = sbr.rel (0) target = $region37
    $region36: #{transformer_decoder_layer.10} parent=1 // pred_region
      _
    $region37: #{transformer_decoder_layer.10} parent=1 // pred_fallthru
      _
    // Predicated region
    $region38: #{transformer_decoder_layer.10} parent=1 // pred_check
      _
    $region39: #{transformer_decoder_layer.10} parent=1 // pred_check_branch
      %159 = sbr.rel (0) target = $region41
    $region40: #{transformer_decoder_layer.10} parent=1 // pred_region
      _
    $region41: #{transformer_decoder_layer.10} parent=1 // pred_fallthru
      _
    %160 = vsyncpa [#allocation3], 1
    %161 = vsyncpa [#allocation5], 1

// kernel: transformer_decoder_layer.9
$region0: #{transformer_decoder_layer.9}
  #allocation0 [shape = 'u32[]', space=smem, size = 0x4, offset = 0x4, fixed_abs, tag = 'smem constant byte address 0x4 - core index']
  #allocation1 [shape = 'u32[72,128]{1,0:T(1,128)}', space=vmem, size = 0x9000, scoped, tag = 'internal scratch']
  %s0 = inlined_call_operand.vmem [shape: f32[2,8,32], index: 0, kind: input, shape index: {}]
  %s1 = inlined_call_operand.vmem [shape: f32[2,8,32], index: 1, kind: input, shape index: {}]
  %s2 = inlined_call_operand.vmem [shape: f32[2,8,32], index: 2, kind: input, shape index: {}]
  %s3 = inlined_call_operand.hbm [shape: f32[2,8,8], index: 3, kind: input, shape index: {}]
  %s4 = inlined_call_operand.vmem [shape: f32[2,8,32], index: 4, kind: output, shape index: {}]
  %s5 = sld [smem:[#allocation0]]
  $region53: #{transformer_decoder_layer.9} parent=0
    _
  %s7 = ssub.s32 1, %s5
  %s8 = scalar_select 0, %s7, %s5
  $region1: #{transformer_decoder_layer.9} parent=0
    #allocation2 [shape = 'u8[8192]{0}', space=vmem, size = 0x2000, scoped, tag = 'input window, operand 3']
    #allocation3 [shape = 's32[2]{0}', space=sflag, size = 0x8, scoped, tag = 'scoped memory for transformer_decoder_layer.9']
    %9 = vsyncpa [#allocation3], 0
    %s10 = scalar_lea.sflag [#allocation3], 1
    %11 = vsyncpa %s10, 0
    loop: start=0, step=1, limit=4
    $region2: #{transformer_decoder_layer.9} parent=1 // loop_pre_header
      _
    $region3: #{transformer_decoder_layer.9} parent=1 // loop_header
      %s13 = sphi 0, %s17
      %p14 = scmp.ge.s32.totalorder %s13, 4
      %s23 = sphi 0, %s25
      %s26 = sphi 0, %s23
      %s27 = sphi 0, %s26
      %s43 = sphi 0, %s27
      %s49 = sphi 0, %s51
      %s52 = sphi 0, %s49
      %s53 = sphi 0, %s52
      %s69 = sphi 0, %s53
      %s75 = sphi 0, %s77
      %s78 = sphi 0, %s75
      %s79 = sphi 0, %s78
      %s95 = sphi 0, %s79
      %s101 = sphi 0, %s103
      %s104 = sphi 0, %s101
      %s105 = sphi 0, %s104
      %s121 = sphi 0, %s105
      %s127 = sphi 0, %s129
      %s130 = sphi 0, %s127
      %s131 = sphi 0, %s130
      %s147 = sphi 0, %s131
    $region4: #{transformer_decoder_layer.9} parent=1 // loop_header_branch
      %16 = sbr.rel (%p14) target = $region8
    $region5: #{transformer_decoder_layer.9} parent=1 // loop_body
      %s18 = ssub.s32 %s13, 1
      %s19 = ssub.s32 %s13, 2
      %s20 = sadd.s32 %s13, 1
      %s21 = ssub.s32 %s13, %s20
      %p22 = scmp.eq.s32.totalorder %s21, 0
      %s24 = sadd.s32 %s23, 1
      %s25 = scalar_select %p22, %s23, %s24
      %p28 = pneg %p22
      %p29 = scmp.eq.s32.totalorder %s13, 1
      %p30 = por %p28, %p29
      %p31 = scmp.ne.s32.totalorder %s23, %s26
      %p32 = scmp.eq.s32.totalorder %s13, 0
      %p33 = por %p31, %p32
      %p34 = scmp.ne.s32.totalorder %s23, %s26
      %p35 = scmp.eq.s32.totalorder %s18, 1
      %p36 = por %p34, %p35
      %p37 = scmp.ne.s32.totalorder %s26, %s27
      %p38 = scmp.eq.s32.totalorder %s18, 0
      %p39 = por %p37, %p38
      %p40 = scmp.ne.s32.totalorder %s26, %s27
      %p41 = scmp.eq.s32.totalorder %s19, 1
      %p42 = por %p40, %p41
      %p44 = scmp.ne.s32.totalorder %s27, %s43
      %p45 = scmp.eq.s32.totalorder %s19, 0
      %p46 = por %p44, %p45
      %s47 = ssub.s32 %s13, %s20
      %p48 = scmp.eq.s32.totalorder %s47, 0
      %s50 = sadd.s32 %s49, 1
      %s51 = scalar_select %p48, %s49, %s50
      %p54 = pneg %p48
      %p55 = scmp.eq.s32.totalorder %s13, 1
      %p56 = por %p54, %p55
      %p57 = scmp.ne.s32.totalorder %s49, %s52
      %p58 = scmp.eq.s32.totalorder %s13, 0
      %p59 = por %p57, %p58
      %p60 = scmp.ne.s32.totalorder %s49, %s52
      %p61 = scmp.eq.s32.totalorder %s18, 1
      %p62 = por %p60, %p61
      %p63 = scmp.ne.s32.totalorder %s52, %s53
      %p64 = scmp.eq.s32.totalorder %s18, 0
      %p65 = por %p63, %p64
      %p66 = scmp.ne.s32.totalorder %s52, %s53
      %p67 = scmp.eq.s32.totalorder %s19, 1
      %p68 = por %p66, %p67
      %p70 = scmp.ne.s32.totalorder %s53, %s69
      %p71 = scmp.eq.s32.totalorder %s19, 0
      %p72 = por %p70, %p71
      %s73 = ssub.s32 %s13, %s20
      %p74 = scmp.eq.s32.totalorder %s73, 0
      %s76 = sadd.s32 %s75, 1
      %s77 = scalar_select %p74, %s75, %s76
      %p80 = pneg %p74
      %p81 = scmp.eq.s32.totalorder %s13, 1
      %p82 = por %p80, %p81
      %p83 = scmp.ne.s32.totalorder %s75, %s78
      %p84 = scmp.eq.s32.totalorder %s13, 0
      %p85 = por %p83, %p84
      %p86 = scmp.ne.s32.totalorder %s75, %s78
      %p87 = scmp.eq.s32.totalorder %s18, 1
      %p88 = por %p86, %p87
      %p89 = scmp.ne.s32.totalorder %s78, %s79
      %p90 = scmp.eq.s32.totalorder %s18, 0
      %p91 = por %p89, %p90
      %p92 = scmp.ne.s32.totalorder %s78, %s79
      %p93 = scmp.eq.s32.totalorder %s19, 1
      %p94 = por %p92, %p93
      %p96 = scmp.ne.s32.totalorder %s79, %s95
      %p97 = scmp.eq.s32.totalorder %s19, 0
      %p98 = por %p96, %p97
      %s99 = ssub.s32 %s13, %s20
      %p100 = scmp.eq.s32.totalorder %s99, 0
      %s102 = sadd.s32 %s101, 1
      %s103 = scalar_select %p100, %s101, %s102
      %p106 = pneg %p100
      %p107 = scmp.eq.s32.totalorder %s13, 1
      %p108 = por %p106, %p107
      %p109 = scmp.ne.s32.totalorder %s101, %s104
      %p110 = scmp.eq.s32.totalorder %s13, 0
      %p111 = por %p109, %p110
      %p112 = scmp.ne.s32.totalorder %s101, %s104
      %p113 = scmp.eq.s32.totalorder %s18, 1
      %p114 = por %p112, %p113
      %p115 = scmp.ne.s32.totalorder %s104, %s105
      %p116 = scmp.eq.s32.totalorder %s18, 0
      %p117 = por %p115, %p116
      %p118 = scmp.ne.s32.totalorder %s104, %s105
      %p119 = scmp.eq.s32.totalorder %s19, 1
      %p120 = por %p118, %p119
      %p122 = scmp.ne.s32.totalorder %s105, %s121
      %p123 = scmp.eq.s32.totalorder %s19, 0
      %p124 = por %p122, %p123
      %s125 = ssub.s32 %s13, %s20
      %p126 = scmp.eq.s32.totalorder %s125, 0
      %s128 = sadd.s32 %s127, 1
      %s129 = scalar_select %p126, %s127, %s128
      %p132 = pneg %p126
      %p133 = scmp.eq.s32.totalorder %s13, 1
      %p134 = por %p132, %p133
      %p135 = scmp.ne.s32.totalorder %s127, %s130
      %p136 = scmp.eq.s32.totalorder %s13, 0
      %p137 = por %p135, %p136
      %p138 = scmp.ne.s32.totalorder %s127, %s130
      %p139 = scmp.eq.s32.totalorder %s18, 1
      %p140 = por %p138, %p139
      %p141 = scmp.ne.s32.totalorder %s130, %s131
      %p142 = scmp.eq.s32.totalorder %s18, 0
      %p143 = por %p141, %p142
      %p144 = scmp.ne.s32.totalorder %s130, %s131
      %p145 = scmp.eq.s32.totalorder %s19, 1
      %p146 = por %p144, %p145
      %p148 = scmp.ne.s32.totalorder %s131, %s147
      %p149 = scmp.eq.s32.totalorder %s19, 0
      %p150 = por %p148, %p149
      %p151 = scmp.le.s32.totalorder 1, %s13
      %p152 = scmp.lt.s32.totalorder %s13, 3
      %p153 = pnand %p151, %p152
      %p154 = pneg %p153
      // Predicated region
      $region9: #{transformer_decoder_layer.9} parent=5 // pred_check
        _
      $region10: #{transformer_decoder_layer.9} parent=5 // pred_check_branch
        %156 = sbr.rel (%p153) target = $region12
      $region11: #{transformer_decoder_layer.9} parent=5 // pred_region
        %s157 = ssub.s32 %s13, 1
      $region12: #{transformer_decoder_layer.9} parent=5 // pred_fallthru
        _
      %p158 = scmp.lt.s32.totalorder %s13, 2
      // Predicated region
      $region13: #{transformer_decoder_layer.9} parent=5 // pred_check
        %p159 = pneg %p158
      $region14: #{transformer_decoder_layer.9} parent=5 // pred_check_branch
        %161 = sbr.rel (%p159) target = $region16
      $region15: #{transformer_decoder_layer.9} parent=5 // pred_region
        // Predicated region
        $region17: #{transformer_decoder_layer.9} parent=15 // pred_check
          %p162 = pneg %p33
        $region18: #{transformer_decoder_layer.9} parent=15 // pred_check_branch
          %164 = sbr.rel (%p162) target = $region20
        $region19: #{transformer_decoder_layer.9} parent=15 // pred_region
          %p165 = scmp.lt.s32.totalorder %s13, 1
          %s166 = scalar_select %p165, %s13, 1
          %s167 = smul.addr %s166, 8
          %s168 = scalar_lea.vmem %s0, %s167
        $region20: #{transformer_decoder_layer.9} parent=15 // pred_fallthru
          _
        // Predicated region
        $region21: #{transformer_decoder_layer.9} parent=15 // pred_check
          %p169 = pneg %p59
        $region22: #{transformer_decoder_layer.9} parent=15 // pred_check_branch
          %171 = sbr.rel (%p169) target = $region24
        $region23: #{transformer_decoder_layer.9} parent=15 // pred_region
          %p172 = scmp.lt.s32.totalorder %s13, 1
          %s173 = scalar_select %p172, %s13, 1
          %s174 = smul.addr %s173, 8
          %s175 = scalar_lea.vmem %s1, %s174
        $region24: #{transformer_decoder_layer.9} parent=15 // pred_fallthru
          _
        // Predicated region
        $region25: #{transformer_decoder_layer.9} parent=15 // pred_check
          %p176 = pneg %p85
        $region26: #{transformer_decoder_layer.9} parent=15 // pred_check_branch
          %178 = sbr.rel (%p176) target = $region28
        $region27: #{transformer_decoder_layer.9} parent=15 // pred_region
          %p179 = scmp.lt.s32.totalorder %s13, 1
          %s180 = scalar_select %p179, %s13, 1
          %s181 = smul.addr %s180, 8
          %s182 = scalar_lea.vmem %s2, %s181
        $region28: #{transformer_decoder_layer.9} parent=15 // pred_fallthru
          _
        // Predicated region
        $region29: #{transformer_decoder_layer.9} parent=15 // pred_check
          %p183 = pneg %p111
        $region30: #{transformer_decoder_layer.9} parent=15 // pred_check_branch
          %185 = sbr.rel (%p183) target = $region32
        $region31: #{transformer_decoder_layer.9} parent=15 // pred_region
          %s186 = sand.u32 %s101, 1
          %s187 = scalar_lea.sflag [#allocation3], %s186
          %s188 = sand.u32 %s101, 1
          %s189 = smul.addr %s188, 8
          %s190 = scalar_lea.vmem [#allocation2], %s189
          %192 = vsyncadd %s187, 0
          %s193 = smul.addr %s13, 8
          %s194 = scalar_lea.hbm %s3, %s193
          %s196 = sshll.u32 %s194, 4
          %s197 = int_to_ptr.hbm [resolvable:$true] %s196
          %s198 = sshll.u32 %s190, 4
          %s199 = int_to_ptr.vmem [resolvable:$true] %s198
          %201 = dma.hbm_to_vmem [thread:$0]  %s197, 128, %s199, %s187
        $region32: #{transformer_decoder_layer.9} parent=15 // pred_fallthru
          _
      $region16: #{transformer_decoder_layer.9} parent=5 // pred_fallthru
        _
      %p202 = scmp.le.s32.totalorder 1, %s13
      %p203 = scmp.lt.s32.totalorder %s13, 3
      %p204 = pnand %p202, %p203
      %p205 = pneg %p204
      // Predicated region
      $region33: #{transformer_decoder_layer.9} parent=5 // pred_check
        _
      $region34: #{transformer_decoder_layer.9} parent=5 // pred_check_branch
        %207 = sbr.rel (%p204) target = $region36
      $region35: #{transformer_decoder_layer.9} parent=5 // pred_region
        %s208 = ssub.s32 %s13, 1
        %s209 = sand.u32 %s104, 1
        %s210 = scalar_lea.sflag [#allocation3], %s209
        %s211 = sand.u32 %s104, 1
        %s212 = smul.addr %s211, 8
        %s213 = scalar_lea.vmem [#allocation2], %s212
        // Predicated region
        $region37: #{transformer_decoder_layer.9} parent=35 // pred_check
          %p214 = pneg %p117
        $region38: #{transformer_decoder_layer.9} parent=35 // pred_check_branch
          %216 = sbr.rel (%p214) target = $region40
        $region39: #{transformer_decoder_layer.9} parent=35 // pred_region
          %218 = dma.done %s210, 128
        $region40: #{transformer_decoder_layer.9} parent=35 // pred_fallthru
          _
        %p219 = scmp.lt.s32.totalorder %s18, 1
        %s220 = scalar_select %p219, %s18, 1
        %s221 = smul.addr %s220, 8
        %s222 = scalar_lea.vmem %s0, %s221
        %p223 = pneg %p39
        %p224 = pneg %p36
        %p225 = scmp.lt.s32.totalorder %s18, 1
        %s226 = scalar_select %p225, %s18, 1
        %s227 = smul.addr %s226, 8
        %s228 = scalar_lea.vmem %s1, %s227
        %p229 = pneg %p65
        %p230 = pneg %p62
        %p231 = scmp.lt.s32.totalorder %s18, 1
        %s232 = scalar_select %p231, %s18, 1
        %s233 = smul.addr %s232, 8
        %s234 = scalar_lea.vmem %s2, %s233
        %p235 = pneg %p91
        %p236 = pneg %p88
        %s237 = sand.u32 %s104, 1
        %s238 = scalar_lea.sflag [#allocation3], %s237
        %s239 = sand.u32 %s104, 1
        %s240 = smul.addr %s239, 8
        %s241 = scalar_lea.vmem [#allocation2], %s240
        %p242 = pneg %p117
        %p243 = pneg %p114
        %p244 = pneg %p143
        %p245 = pneg %p140
        %p246 = scmp.lt.s32.totalorder %s18, 1
        %s247 = scalar_select %p246, %s18, 1
        %s248 = smul.addr %s247, 8
        %s249 = scalar_lea.vmem %s4, %s248
        %p250 = scmp.lt.s32.totalorder %s18, 1
        %s251 = scalar_select %p250, %s18, 1
        %s252 = smul.addr %s251, 8
        %s253 = scalar_lea.vmem %s0, %s252
        %p254 = scmp.lt.s32.totalorder %s18, 1
        %s255 = scalar_select %p254, %s18, 1
        %s256 = smul.addr %s255, 8
        %s257 = scalar_lea.vmem %s1, %s256
        %p258 = scmp.lt.s32.totalorder %s18, 1
        %s259 = scalar_select %p258, %s18, 1
        %s260 = smul.addr %s259, 8
        %s261 = scalar_lea.vmem %s2, %s260
        %p262 = scmp.lt.s32.totalorder %s18, 1
        %s263 = scalar_select %p262, %s18, 1
        %s264 = smul.addr %s263, 8
        %s265 = scalar_lea.vmem %s4, %s264
        %v267 = vld [vmem:[%s253] sm:$0xff]
        %v268 = vpack.c.bf16 %v267, %v267
        %v269 = vld [vmem:[%s257] sm:$0xff]
        %v270 = vpack.c.bf16 %v269, %v269
        %v271 = vld [vmem:[%s261] sm:$0xff]
        %v272 = vpack.c.bf16 %v271, %v271
        %v273 = vld [vmem:[%s213] sm:$0xff]
        %vm274 = vcmask 64512
        %v276 = vsel %vm274, %v268, 0
        %v279 = vsel %vm274, %v270, 0
        %281 = vmatpush.bf16.xpose.msra.mxu0 0
        %282 = vmatpush.bf16.xpose.msra.mxu0 0
        %283 = vmatpush.bf16.xpose.msra.mxu0 0
        %284 = vmatpush.bf16.xpose.msra.mxu0 0
        %285 = vmatpush.bf16.xpose.msra.mxu0 0
        %286 = vmatpush.bf16.xpose.msra.mxu0 0
        %287 = vmatpush.bf16.xpose.msra.mxu0 0
        %288 = vmatpush.bf16.xpose.msra.mxu0 %v279
        %289 = vmatmul.bf16.gmra.mxu0 %v276
        %v290 = vpop.f32.mrf.mxu0
        %v291 = vadd.f32 0.0, %v290
        %v292 = vpop.f32.mrf.mxu0
        %293 = vdwg.mxu0
        %v294 = vmul.f32 %v291, 0.35355338
        %v295 = vadd.f32 %v294, %v273
        %v296 = vsel %vm274, %v295, -inf
        %297 = vmax.xlane.f32.xlu0 %v296
        %v298 = vpop.xlane.xlu0 %297
        %v299 = vsub.f32 %v295, %v298
        %v300 = vmul.f32 %v299, 1.442695
        %v301 = vpow.pop %v300
        %v302 = vsel %vm274, %v301, 0.0
        %303 = vadd.xlane.f32.xlu0 %v302
        %v304 = vpop.xlane.xlu0 %303
        %v305 = vrcp.pop %v304
        %v306 = vmul.f32 %v301, %v305
        %v307 = vpack.c.bf16 %v306, %v306
        %v309 = vsel %vm274, %v307, 0
        %vm311 = vcmask 1043456
        %v313 = vsel %vm311, %v272, 0
        %315 = vmatpush.bf16.msra.mxu0 0
        %316 = vmatpush.bf16.msra.mxu0 0
        %317 = vmatpush.bf16.msra.mxu0 0
        %318 = vmatpush.bf16.msra.mxu0 0
        %319 = vmatpush.bf16.msra.mxu0 0
        %320 = vmatpush.bf16.msra.mxu0 0
        %321 = vmatpush.bf16.msra.mxu0 0
        %322 = vmatpush.bf16.msra.mxu0 %v313
        %323 = vmatmul.bf16.gmra.mxu0 %v309
        %v324 = vpop.f32.mrf.mxu0
        %v325 = vadd.f32 0.0, %v324
        %v326 = vpop.f32.mrf.mxu0
        %327 = vdwg.mxu0
        %v329 = vunpack.c.l.b16 %v268
        %v330 = vpack.c.b16 %v329, %v329
        %331 = vrot.lane.b32.xlu0 %v330, 120
        %v332 = vpop.permute.xlu0 %331
        %v334 = vunpack.c.l.b16 %v270
        %v335 = vpack.c.b16 %v334, %v334
        %336 = vrot.lane.b32.xlu0 %v335, 120
        %v337 = vpop.permute.xlu0 %336
        %v339 = vsel %vm274, %v332, 0
        %v342 = vsel %vm274, %v337, 0
        %344 = vmatpush.bf16.xpose.msra.mxu0 0
        %345 = vmatpush.bf16.xpose.msra.mxu0 0
        %346 = vmatpush.bf16.xpose.msra.mxu0 0
        %347 = vmatpush.bf16.xpose.msra.mxu0 0
        %348 = vmatpush.bf16.xpose.msra.mxu0 0
        %349 = vmatpush.bf16.xpose.msra.mxu0 0
        %350 = vmatpush.bf16.xpose.msra.mxu0 0
        %351 = vmatpush.bf16.xpose.msra.mxu0 %v342
        %352 = vmatmul.bf16.gmra.mxu0 %v339
        %v353 = vpop.f32.mrf.mxu0
        %v354 = vadd.f32 0.0, %v353
        %v355 = vpop.f32.mrf.mxu0
        %356 = vdwg.mxu0
        %v357 = vmul.f32 %v354, 0.35355338
        %v358 = vadd.f32 %v357, %v273
        %v359 = vsel %vm274, %v358, -inf
        %360 = vmax.xlane.f32.xlu0 %v359
        %v361 = vpop.xlane.xlu0 %360
        %v362 = vsub.f32 %v358, %v361
        %v363 = vmul.f32 %v362, 1.442695
        %v364 = vpow.pop %v363
        %v365 = vsel %vm274, %v364, 0.0
        %366 = vadd.xlane.f32.xlu0 %v365
        %v367 = vpop.xlane.xlu0 %366
        %v368 = vrcp.pop %v367
        %v369 = vmul.f32 %v364, %v368
        %v370 = vpack.c.bf16 %v369, %v369
        %v372 = vunpack.c.l.b16 %v272
        %v373 = vpack.c.b16 %v372, %v372
        %374 = vrot.lane.b32.xlu0 %v373, 120
        %v375 = vpop.permute.xlu0 %374
        %v377 = vsel %vm274, %v370, 0
        %v380 = vsel %vm311, %v375, 0
        %382 = vmatpush.bf16.msra.mxu0 0
        %383 = vmatpush.bf16.msra.mxu0 0
        %384 = vmatpush.bf16.msra.mxu0 0
        %385 = vmatpush.bf16.msra.mxu0 0
        %386 = vmatpush.bf16.msra.mxu0 0
        %387 = vmatpush.bf16.msra.mxu0 0
        %388 = vmatpush.bf16.msra.mxu0 0
        %389 = vmatpush.bf16.msra.mxu0 %v380
        %390 = vmatmul.bf16.gmra.mxu0 %v377
        %v391 = vpop.f32.mrf.mxu0
        %v392 = vadd.f32 0.0, %v391
        %v393 = vpop.f32.mrf.mxu0
        %394 = vdwg.mxu0
        %395 = vrot.lane.b32.xlu0 %v330, 112
        %v396 = vpop.permute.xlu0 %395
        %397 = vrot.lane.b32.xlu0 %v335, 112
        %v398 = vpop.permute.xlu0 %397
        %v400 = vsel %vm274, %v396, 0
        %v403 = vsel %vm274, %v398, 0
        %405 = vmatpush.bf16.xpose.msra.mxu0 0
        %406 = vmatpush.bf16.xpose.msra.mxu0 0
        %407 = vmatpush.bf16.xpose.msra.mxu0 0
        %408 = vmatpush.bf16.xpose.msra.mxu0 0
        %409 = vmatpush.bf16.xpose.msra.mxu0 0
        %410 = vmatpush.bf16.xpose.msra.mxu0 0
        %411 = vmatpush.bf16.xpose.msra.mxu0 0
        %412 = vmatpush.bf16.xpose.msra.mxu0 %v403
        %413 = vmatmul.bf16.gmra.mxu0 %v400
        %v414 = vpop.f32.mrf.mxu0
        %v415 = vadd.f32 0.0, %v414
        %v416 = vpop.f32.mrf.mxu0
        %417 = vdwg.mxu0
        %v418 = vmul.f32 %v415, 0.35355338
        %v419 = vadd.f32 %v418, %v273
        %v420 = vsel %vm274, %v419, -inf
        %421 = vmax.xlane.f32.xlu0 %v420
        %v422 = vpop.xlane.xlu0 %421
        %v423 = vsub.f32 %v419, %v422
        %v424 = vmul.f32 %v423, 1.442695
        %v425 = vpow.pop %v424
        %v426 = vsel %vm274, %v425, 0.0
        %427 = vadd.xlane.f32.xlu0 %v426
        %v428 = vpop.xlane.xlu0 %427
        %v429 = vrcp.pop %v428
        %v430 = vmul.f32 %v425, %v429
        %v431 = vpack.c.bf16 %v430, %v430
        %432 = vrot.lane.b32.xlu0 %v373, 112
        %v433 = vpop.permute.xlu0 %432
        %v435 = vsel %vm274, %v431, 0
        %v438 = vsel %vm311, %v433, 0
        %440 = vmatpush.bf16.msra.mxu0 0
        %441 = vmatpush.bf16.msra.mxu0 0
        %442 = vmatpush.bf16.msra.mxu0 0
        %443 = vmatpush.bf16.msra.mxu0 0
        %444 = vmatpush.bf16.msra.mxu0 0
        %445 = vmatpush.bf16.msra.mxu0 0
        %446 = vmatpush.bf16.msra.mxu0 0
        %447 = vmatpush.bf16.msra.mxu0 %v438
        %448 = vmatmul.bf16.gmra.mxu0 %v435
        %v449 = vpop.f32.mrf.mxu0
        %v450 = vadd.f32 0.0, %v449
        %v451 = vpop.f32.mrf.mxu0
        %452 = vdwg.mxu0
        %453 = vrot.lane.b32.xlu0 %v330, 104
        %v454 = vpop.permute.xlu0 %453
        %455 = vrot.lane.b32.xlu0 %v335, 104
        %v456 = vpop.permute.xlu0 %455
        %v458 = vsel %vm274, %v454, 0
        %v461 = vsel %vm274, %v456, 0
        %463 = vmatpush.bf16.xpose.msra.mxu0 0
        %464 = vmatpush.bf16.xpose.msra.mxu0 0
        %465 = vmatpush.bf16.xpose.msra.mxu0 0
        %466 = vmatpush.bf16.xpose.msra.mxu0 0
        %467 = vmatpush.bf16.xpose.msra.mxu0 0
        %468 = vmatpush.bf16.xpose.msra.mxu0 0
        %469 = vmatpush.bf16.xpose.msra.mxu0 0
        %470 = vmatpush.bf16.xpose.msra.mxu0 %v461
        %471 = vmatmul.bf16.gmra.mxu0 %v458
        %v472 = vpop.f32.mrf.mxu0
        %v473 = vadd.f32 0.0, %v472
        %v474 = vpop.f32.mrf.mxu0
        %475 = vdwg.mxu0
        %v476 = vmul.f32 %v473, 0.35355338
        %v477 = vadd.f32 %v476, %v273
        %v478 = vsel %vm274, %v477, -inf
        %479 = vmax.xlane.f32.xlu0 %v478
        %v480 = vpop.xlane.xlu0 %479
        %v481 = vsub.f32 %v477, %v480
        %v482 = vmul.f32 %v481, 1.442695
        %v483 = vpow.pop %v482
        %v484 = vsel %vm274, %v483, 0.0
        %485 = vadd.xlane.f32.xlu0 %v484
        %v486 = vpop.xlane.xlu0 %485
        %v487 = vrcp.pop %v486
        %v488 = vmul.f32 %v483, %v487
        %v489 = vpack.c.bf16 %v488, %v488
        %490 = vrot.lane.b32.xlu0 %v373, 104
        %v491 = vpop.permute.xlu0 %490
        %v493 = vsel %vm274, %v489, 0
        %v496 = vsel %vm311, %v491, 0
        %498 = vmatpush.bf16.msra.mxu0 0
        %499 = vmatpush.bf16.msra.mxu0 0
        %500 = vmatpush.bf16.msra.mxu0 0
        %501 = vmatpush.bf16.msra.mxu0 0
        %502 = vmatpush.bf16.msra.mxu0 0
        %503 = vmatpush.bf16.msra.mxu0 0
        %504 = vmatpush.bf16.msra.mxu0 0
        %505 = vmatpush.bf16.msra.mxu0 %v496
        %506 = vmatmul.bf16.gmra.mxu0 %v493
        %v507 = vpop.f32.mrf.mxu0
        %v508 = vadd.f32 0.0, %v507
        %v509 = vpop.f32.mrf.mxu0
        %510 = vdwg.mxu0
        %512 = vrot.lane.b32.xlu0 %v392, 8
        %v513 = vpop.permute.xlu0 %512
        %516 = vrot.lane.b32.xlu0 %v450, 16
        %v517 = vpop.permute.xlu0 %516
        %520 = vrot.lane.b32.xlu0 %v508, 24
        %v521 = vpop.permute.xlu0 %520
        %v523 = vsel %vm274, %v325, %v513
        %vm524 = vcmask 130048
        %v525 = vsel %vm524, %v523, %v517
        %vm526 = vcmask 195584
        %v527 = vsel %vm526, %v525, %v521
        %vm528 = vcmask 261120
        %529 = vst.msk [vmem:[%s265] sm:$0xff] %vm528, %v527
        %p530 = scmp.lt.s32.totalorder %s18, 1
        %s531 = scalar_select %p530, %s18, 1
        %s532 = smul.addr %s531, 8
        %s533 = scalar_lea.vmem %s4, %s532
        // Predicated region
        $region41: #{transformer_decoder_layer.9} parent=35 // pred_check
          %p534 = pneg %p140
        $region42: #{transformer_decoder_layer.9} parent=35 // pred_check_branch
          %536 = sbr.rel (%p534) target = $region44
        $region43: #{transformer_decoder_layer.9} parent=35 // pred_region
          _
        $region44: #{transformer_decoder_layer.9} parent=35 // pred_fallthru
          _
      $region36: #{transformer_decoder_layer.9} parent=5 // pred_fallthru
        _
      %p537 = scmp.le.s32.totalorder 2, %s13
      // Predicated region
      $region45: #{transformer_decoder_layer.9} parent=5 // pred_check
        %p538 = pneg %p537
      $region46: #{transformer_decoder_layer.9} parent=5 // pred_check_branch
        %540 = sbr.rel (%p538) target = $region48
      $region47: #{transformer_decoder_layer.9} parent=5 // pred_region
        %s541 = ssub.s32 %s13, 2
        // Predicated region
        $region49: #{transformer_decoder_layer.9} parent=47 // pred_check
          %p542 = pneg %p146
        $region50: #{transformer_decoder_layer.9} parent=47 // pred_check_branch
          %544 = sbr.rel (%p542) target = $region52
        $region51: #{transformer_decoder_layer.9} parent=47 // pred_region
          %p545 = scmp.lt.s32.totalorder %s19, 1
          %s546 = scalar_select %p545, %s19, 1
          %s547 = smul.addr %s546, 8
          %s548 = scalar_lea.vmem %s4, %s547
        $region52: #{transformer_decoder_layer.9} parent=47 // pred_fallthru
          _
      $region48: #{transformer_decoder_layer.9} parent=5 // pred_fallthru
        _
    $region6: #{transformer_decoder_layer.9} parent=1 // loop_footer
      %s17 = sadd.s32 1, %s13
    $region7: #{transformer_decoder_layer.9} parent=1 // loop_footer_branch
      %12 = sbr.rel target = $region3
    $region8: #{transformer_decoder_layer.9} parent=1 // loop_exit
      _
    %549 = vsyncpa [#allocation3], 1
    %s550 = scalar_lea.sflag [#allocation3], 1
    %551 = vsyncpa %s550, 1

// kernel: transformer_decoder_layer.11
$region0: #{transformer_decoder_layer.11}
  #allocation0 [shape = 'u32[]', space=smem, size = 0x4, offset = 0x4, fixed_abs, tag = 'smem constant byte address 0x4 - core index']
  #allocation1 [shape = 'u32[72,128]{1,0:T(1,128)}', space=vmem, size = 0x9000, scoped, tag = 'internal scratch']
  %s0 = inlined_call_operand.vmem [shape: f32[16,32], index: 0, kind: input, shape index: {}]
  %s1 = inlined_call_operand.hbm [shape: f32[32,32], index: 1, kind: input, shape index: {}]
  %s2 = inlined_call_operand.vmem [shape: f32[1,32], index: 2, kind: input, shape index: {}]
  %s3 = inlined_call_operand.vmem [shape: f32[16,32], index: 3, kind: output, shape index: {}]
  %s4 = sld [smem:[#allocation0]]
  $region26: #{transformer_decoder_layer.11} parent=0
    _
  %s6 = ssub.s32 1, %s4
  %s7 = scalar_select 0, %s6, %s4
  $region1: #{transformer_decoder_layer.11} parent=0
    #allocation2 [shape = 'u8[16384]{0}', space=vmem, size = 0x4000, scoped, tag = 'input window, operand 1, single buffered']
    #allocation3 [shape = 's32[1]{0}', space=sflag, size = 0x4, scoped, tag = 'scoped memory for transformer_decoder_layer.11']
    %8 = vsyncpa [#allocation3], 0
    // Predicated region
    $region2: #{transformer_decoder_layer.11} parent=1 // pred_check
      _
    $region3: #{transformer_decoder_layer.11} parent=1 // pred_check_branch
      %10 = sbr.rel (0) target = $region5
    $region4: #{transformer_decoder_layer.11} parent=1 // pred_region
      _
    $region5: #{transformer_decoder_layer.11} parent=1 // pred_fallthru
      _
    // Predicated region
    $region6: #{transformer_decoder_layer.11} parent=1 // pred_check
      _
    $region7: #{transformer_decoder_layer.11} parent=1 // pred_check_branch
      %12 = sbr.rel (0) target = $region9
    $region8: #{transformer_decoder_layer.11} parent=1 // pred_region
      %14 = vsyncadd [#allocation3], 0
      %s15 = sshll.u32 %s1, 4
      %s16 = int_to_ptr.hbm [resolvable:$true] %s15
      %s17 = sshll.u32 [#allocation2], 4
      %s18 = int_to_ptr.vmem [resolvable:$true] %s17
      %23 = dma.hbm_to_vmem [thread:$0]  %s16, 512, %s18, [#allocation3], 128, 128, 8
    $region9: #{transformer_decoder_layer.11} parent=1 // pred_fallthru
      _
    // Predicated region
    $region10: #{transformer_decoder_layer.11} parent=1 // pred_check
      _
    $region11: #{transformer_decoder_layer.11} parent=1 // pred_check_branch
      %25 = sbr.rel (0) target = $region13
    $region12: #{transformer_decoder_layer.11} parent=1 // pred_region
      _
    $region13: #{transformer_decoder_layer.11} parent=1 // pred_fallthru
      _
    // Predicated region
    $region14: #{transformer_decoder_layer.11} parent=1 // pred_check
      _
    $region15: #{transformer_decoder_layer.11} parent=1 // pred_check_branch
      %27 = sbr.rel (0) target = $region17
    $region16: #{transformer_decoder_layer.11} parent=1 // pred_region
      %29 = dma.done [#allocation3], 512
    $region17: #{transformer_decoder_layer.11} parent=1 // pred_fallthru
      _
    %v31 = vld [vmem:[%s0] sm:$0xff]
    %v32 = vld [vmem:[%s0 + $0x8] sm:$0xff]
    %v33 = vpack.c.bf16 %v32, %v31
    %v34 = vld [vmem:[#allocation2] sm:$0xff]
    %v35 = vld [vmem:[#allocation2 + $0x8] sm:$0xff]
    %v36 = vld [vmem:[#allocation2 + $0x10] sm:$0xff]
    %v37 = vld [vmem:[#allocation2 + $0x18] sm:$0xff]
    %v38 = vpack.c.bf16 %v35, %v34
    %v39 = vpack.c.bf16 %v37, %v36
    %v40 = vld [vmem:[%s2] sm:$0x1]
    %v42 = vperm.slane %v40, 0
    %vm44 = vcmask 261120
    %v46 = vsel %vm44, %v33, 0
    %48 = vmatpush.bf16.msra.mxu0 0
    %49 = vmatpush.bf16.msra.mxu0 0
    %50 = vmatpush.bf16.msra.mxu0 0
    %51 = vmatpush.bf16.msra.mxu0 0
    %52 = vmatpush.bf16.msra.mxu0 0
    %53 = vmatpush.bf16.msra.mxu0 0
    %54 = vmatpush.bf16.msra.mxu0 %v39
    %55 = vmatpush.bf16.msra.mxu0 %v38
    %56 = vmatmul.bf16.gmra.mxu0 %v46
    %v57 = vpop.f32.mrf.mxu0
    %v58 = vadd.f32 %v42, %v57
    %v59 = vpop.f32.mrf.mxu0
    %v60 = vadd.f32 %v42, %v59
    %61 = vdwg.mxu0
    %62 = vst.msk [vmem:[%s3] sm:$0xff] %vm44, %v58
    %63 = vst.msk [vmem:[%s3 + $0x8] sm:$0xff] %vm44, %v60
    // Predicated region
    $region18: #{transformer_decoder_layer.11} parent=1 // pred_check
      _
    $region19: #{transformer_decoder_layer.11} parent=1 // pred_check_branch
      %65 = sbr.rel (0) target = $region21
    $region20: #{transformer_decoder_layer.11} parent=1 // pred_region
      _
    $region21: #{transformer_decoder_layer.11} parent=1 // pred_fallthru
      _
    // Predicated region
    $region22: #{transformer_decoder_layer.11} parent=1 // pred_check
      _
    $region23: #{transformer_decoder_layer.11} parent=1 // pred_check_branch
      %67 = sbr.rel (0) target = $region25
    $region24: #{transformer_decoder_layer.11} parent=1 // pred_region
      _
    $region25: #{transformer_decoder_layer.11} parent=1 // pred_fallthru
      _
    %68 = vsyncpa [#allocation3], 1

// kernel: transformer_decoder_layer.14
$region0: #{transformer_decoder_layer.14}
  #allocation0 [shape = 'u32[]', space=smem, size = 0x4, offset = 0x4, fixed_abs, tag = 'smem constant byte address 0x4 - core index']
  #allocation1 [shape = 'u32[72,128]{1,0:T(1,128)}', space=vmem, size = 0x9000, scoped, tag = 'internal scratch']
  %s0 = inlined_call_operand.vmem [shape: f32[16,32], index: 0, kind: input, shape index: {}]
  %s1 = inlined_call_operand.hbm [shape: f32[32,32], index: 1, kind: input, shape index: {}]
  %s2 = inlined_call_operand.vmem [shape: f32[1,32], index: 2, kind: input, shape index: {}]
  %s3 = inlined_call_operand.vmem [shape: f32[16,32], index: 3, kind: input, shape index: {}]
  %s4 = inlined_call_operand.vmem [shape: f32[1,32], index: 4, kind: input, shape index: {}]
  %s5 = inlined_call_operand.vmem [shape: f32[1,32], index: 5, kind: input, shape index: {}]
  %s6 = inlined_call_operand.vmem [shape: f32[16,32], index: 6, kind: output, shape index: {}]
  %s7 = sld [smem:[#allocation0]]
  $region38: #{transformer_decoder_layer.14} parent=0
    _
  %s9 = ssub.s32 1, %s7
  %s10 = scalar_select 0, %s9, %s7
  $region1: #{transformer_decoder_layer.14} parent=0
    #allocation2 [shape = 'u8[16384]{0}', space=vmem, size = 0x4000, scoped, tag = 'input window, operand 1, single buffered']
    #allocation3 [shape = 's32[1]{0}', space=sflag, size = 0x4, scoped, tag = 'scoped memory for transformer_decoder_layer.14']
    %11 = vsyncpa [#allocation3], 0
    // Predicated region
    $region2: #{transformer_decoder_layer.14} parent=1 // pred_check
      _
    $region3: #{transformer_decoder_layer.14} parent=1 // pred_check_branch
      %13 = sbr.rel (0) target = $region5
    $region4: #{transformer_decoder_layer.14} parent=1 // pred_region
      _
    $region5: #{transformer_decoder_layer.14} parent=1 // pred_fallthru
      _
    // Predicated region
    $region6: #{transformer_decoder_layer.14} parent=1 // pred_check
      _
    $region7: #{transformer_decoder_layer.14} parent=1 // pred_check_branch
      %15 = sbr.rel (0) target = $region9
    $region8: #{transformer_decoder_layer.14} parent=1 // pred_region
      %17 = vsyncadd [#allocation3], 0
      %s18 = sshll.u32 %s1, 4
      %s19 = int_to_ptr.hbm [resolvable:$true] %s18
      %s20 = sshll.u32 [#allocation2], 4
      %s21 = int_to_ptr.vmem [resolvable:$true] %s20
      %26 = dma.hbm_to_vmem [thread:$0]  %s19, 512, %s21, [#allocation3], 128, 128, 8
    $region9: #{transformer_decoder_layer.14} parent=1 // pred_fallthru
      _
    // Predicated region
    $region10: #{transformer_decoder_layer.14} parent=1 // pred_check
      _
    $region11: #{transformer_decoder_layer.14} parent=1 // pred_check_branch
      %28 = sbr.rel (0) target = $region13
    $region12: #{transformer_decoder_layer.14} parent=1 // pred_region
      _
    $region13: #{transformer_decoder_layer.14} parent=1 // pred_fallthru
      _
    // Predicated region
    $region14: #{transformer_decoder_layer.14} parent=1 // pred_check
      _
    $region15: #{transformer_decoder_layer.14} parent=1 // pred_check_branch
      %30 = sbr.rel (0) target = $region17
    $region16: #{transformer_decoder_layer.14} parent=1 // pred_region
      _
    $region17: #{transformer_decoder_layer.14} parent=1 // pred_fallthru
      _
    // Predicated region
    $region18: #{transformer_decoder_layer.14} parent=1 // pred_check
      _
    $region19: #{transformer_decoder_layer.14} parent=1 // pred_check_branch
      %32 = sbr.rel (0) target = $region21
    $region20: #{transformer_decoder_layer.14} parent=1 // pred_region
      _
    $region21: #{transformer_decoder_layer.14} parent=1 // pred_fallthru
      _
    // Predicated region
    $region22: #{transformer_decoder_layer.14} parent=1 // pred_check
      _
    $region23: #{transformer_decoder_layer.14} parent=1 // pred_check_branch
      %34 = sbr.rel (0) target = $region25
    $region24: #{transformer_decoder_layer.14} parent=1 // pred_region
      _
    $region25: #{transformer_decoder_layer.14} parent=1 // pred_fallthru
      _
    // Predicated region
    $region26: #{transformer_decoder_layer.14} parent=1 // pred_check
      _
    $region27: #{transformer_decoder_layer.14} parent=1 // pred_check_branch
      %36 = sbr.rel (0) target = $region29
    $region28: #{transformer_decoder_layer.14} parent=1 // pred_region
      %38 = dma.done [#allocation3], 512
    $region29: #{transformer_decoder_layer.14} parent=1 // pred_fallthru
      _
    %v40 = vld [vmem:[%s0] sm:$0xff]
    %v41 = vld [vmem:[%s0 + $0x8] sm:$0xff]
    %v42 = vpack.c.bf16 %v41, %v40
    %v43 = vld [vmem:[#allocation2] sm:$0xff]
    %v44 = vld [vmem:[#allocation2 + $0x8] sm:$0xff]
    %v45 = vld [vmem:[#allocation2 + $0x10] sm:$0xff]
    %v46 = vld [vmem:[#allocation2 + $0x18] sm:$0xff]
    %v47 = vpack.c.bf16 %v44, %v43
    %v48 = vpack.c.bf16 %v46, %v45
    %v49 = vld [vmem:[%s2] sm:$0x1]
    %v51 = vperm.slane %v49, 0
    %vm53 = vcmask 261120
    %v55 = vsel %vm53, %v42, 0
    %57 = vmatpush.bf16.msra.mxu0 0
    %58 = vmatpush.bf16.msra.mxu0 0
    %59 = vmatpush.bf16.msra.mxu0 0
    %60 = vmatpush.bf16.msra.mxu0 0
    %61 = vmatpush.bf16.msra.mxu0 0
    %62 = vmatpush.bf16.msra.mxu0 0
    %63 = vmatpush.bf16.msra.mxu0 %v48
    %64 = vmatpush.bf16.msra.mxu0 %v47
    %65 = vmatmul.bf16.gmra.mxu0 %v55
    %v66 = vpop.f32.mrf.mxu0
    %v67 = vadd.f32 %v51, %v66
    %v68 = vpop.f32.mrf.mxu0
    %v69 = vadd.f32 %v51, %v68
    %70 = vdwg.mxu0
    %v71 = vld [vmem:[%s3] sm:$0xff]
    %v72 = vld [vmem:[%s3 + $0x8] sm:$0xff]
    %v73 = vadd.f32 %v67, %v71
    %v74 = vadd.f32 %v69, %v72
    %v75 = vsel %vm53, %v73, 0.0
    %76 = vadd.xlane.f32.xlu0 %v75
    %v77 = vpop.xlane.xlu0 %76
    %v78 = vsel %vm53, %v74, 0.0
    %79 = vadd.xlane.f32.xlu0 %v78
    %v80 = vpop.xlane.xlu0 %79
    %v81 = vrcp.pop 32.0
    %v82 = vmul.f32 32.0, %v81
    %v83 = vsub.f32 1.0, %v82
    %v84 = vmul.f32 %v81, %v83
    %v85 = vadd.f32 %v81, %v84
    %vm86 = vweird.f32 %v81
    %v87 = vsel %vm86, %v81, %v85
    %v88 = vmul.f32 %v77, %v87
    %v89 = vmul.f32 %v80, %v87
    %v90 = vsub.f32 %v73, %v88
    %v91 = vsub.f32 %v74, %v89
    %v92 = vmul.f32 %v90, %v90
    %v93 = vmul.f32 %v91, %v91
    %v94 = vsel %vm53, %v92, 0.0
    %95 = vadd.xlane.f32.xlu0 %v94
    %v96 = vpop.xlane.xlu0 %95
    %v97 = vsel %vm53, %v93, 0.0
    %98 = vadd.xlane.f32.xlu0 %v97
    %v99 = vpop.xlane.xlu0 %98
    %v100 = vmul.f32 %v96, %v87
    %v101 = vmul.f32 %v99, %v87
    %v102 = vadd.f32 %v100, 1e-06
    %v103 = vadd.f32 %v101, 1e-06
    %v104 = vrsqrt.pop %v102
    %v105 = vmul.f32 %v104, %v102
    %v106 = vmul.f32 %v105, %v104
    %v107 = vmul.f32 0.5, %v106
    %v108 = vsub.f32 1.5, %v107
    %v109 = vmul.f32 %v104, %v108
    %vm110 = vweird.f32 %v102
    %vm111 = vweird.f32 %v104
    %vm112 = vmor %vm110, %vm111
    %v113 = vsel %vm112, %v104, %v109
    %v114 = vrsqrt.pop %v103
    %v115 = vmul.f32 %v114, %v103
    %v116 = vmul.f32 %v115, %v114
    %v117 = vmul.f32 0.5, %v116
    %v118 = vsub.f32 1.5, %v117
    %v119 = vmul.f32 %v114, %v118
    %vm120 = vweird.f32 %v103
    %vm121 = vweird.f32 %v114
    %vm122 = vmor %vm120, %vm121
    %v123 = vsel %vm122, %v114, %v119
    %v124 = vmul.f32 %v90, %v113
    %v125 = vmul.f32 %v91, %v123
    %v126 = vld [vmem:[%s4] sm:$0x1]
    %v128 = vperm.slane %v126, 0
    %v130 = vmul.f32 %v124, %v128
    %v131 = vmul.f32 %v125, %v128
    %v132 = vld [vmem:[%s5] sm:$0x1]
    %v134 = vperm.slane %v132, 0
    %v136 = vadd.f32 %v130, %v134
    %v137 = vadd.f32 %v131, %v134
    %138 = vst.msk [vmem:[%s6] sm:$0xff] %vm53, %v136
    %139 = vst.msk [vmem:[%s6 + $0x8] sm:$0xff] %vm53, %v137
    // Predicated region
    $region30: #{transformer_decoder_layer.14} parent=1 // pred_check
      _
    $region31: #{transformer_decoder_layer.14} parent=1 // pred_check_branch
      %141 = sbr.rel (0) target = $region33
    $region32: #{transformer_decoder_layer.14} parent=1 // pred_region
      _
    $region33: #{transformer_decoder_layer.14} parent=1 // pred_fallthru
      _
    // Predicated region
    $region34: #{transformer_decoder_layer.14} parent=1 // pred_check
      _
    $region35: #{transformer_decoder_layer.14} parent=1 // pred_check_branch
      %143 = sbr.rel (0) target = $region37
    $region36: #{transformer_decoder_layer.14} parent=1 // pred_region
      _
    $region37: #{transformer_decoder_layer.14} parent=1 // pred_fallthru
      _
    %144 = vsyncpa [#allocation3], 1

// kernel: transformer_decoder_layer.15
$region0: #{transformer_decoder_layer.15}
  #allocation0 [shape = 'u32[]', space=smem, size = 0x4, offset = 0x4, fixed_abs, tag = 'smem constant byte address 0x4 - core index']
  #allocation1 [shape = 'u32[72,128]{1,0:T(1,128)}', space=vmem, size = 0x9000, scoped, tag = 'internal scratch']
  %s0 = inlined_call_operand.vmem [shape: f32[16,32], index: 0, kind: input, shape index: {}, may-alias: {0,5}]
  %s1 = inlined_call_operand.vmem [shape: f32[32,64], index: 1, kind: input, shape index: {}]
  %s2 = inlined_call_operand.vmem [shape: f32[1,64], index: 2, kind: input, shape index: {}]
  %s3 = inlined_call_operand.vmem [shape: f32[64,32], index: 3, kind: input, shape index: {}]
  %s4 = inlined_call_operand.vmem [shape: f32[1,32], index: 4, kind: input, shape index: {}]
  %s5 = inlined_call_operand.vmem [shape: f32[16,32], index: 5, kind: input, shape index: {}, may-alias: {0,5}]
  %s6 = inlined_call_operand.vmem [shape: f32[1,32], index: 6, kind: input, shape index: {}]
  %s7 = inlined_call_operand.vmem [shape: f32[1,32], index: 7, kind: input, shape index: {}]
  %s8 = inlined_call_operand.hbm [shape: f32[16,32], index: 8, kind: output, shape index: {}]
  %s9 = sld [smem:[#allocation0]]
  $region42: #{transformer_decoder_layer.15} parent=0
    _
  %s11 = ssub.s32 1, %s9
  %s12 = scalar_select 0, %s11, %s9
  $region1: #{transformer_decoder_layer.15} parent=0
    #allocation2 [shape = 'u8[8192]{0}', space=vmem, size = 0x2000, scoped, tag = 'output window, operand 0, single buffered']
    #allocation3 [shape = 's32[1]{0}', space=sflag, size = 0x4, scoped, tag = 'scoped memory for transformer_decoder_layer.15']
    %13 = vsyncpa [#allocation3], 0
    // Predicated region
    $region2: #{transformer_decoder_layer.15} parent=1 // pred_check
      _
    $region3: #{transformer_decoder_layer.15} parent=1 // pred_check_branch
      %15 = sbr.rel (0) target = $region5
    $region4: #{transformer_decoder_layer.15} parent=1 // pred_region
      _
    $region5: #{transformer_decoder_layer.15} parent=1 // pred_fallthru
      _
    // Predicated region
    $region6: #{transformer_decoder_layer.15} parent=1 // pred_check
      _
    $region7: #{transformer_decoder_layer.15} parent=1 // pred_check_branch
      %17 = sbr.rel (0) target = $region9
    $region8: #{transformer_decoder_layer.15} parent=1 // pred_region
      _
    $region9: #{transformer_decoder_layer.15} parent=1 // pred_fallthru
      _
    // Predicated region
    $region10: #{transformer_decoder_layer.15} parent=1 // pred_check
      _
    $region11: #{transformer_decoder_layer.15} parent=1 // pred_check_branch
      %19 = sbr.rel (0) target = $region13
    $region12: #{transformer_decoder_layer.15} parent=1 // pred_region
      _
    $region13: #{transformer_decoder_layer.15} parent=1 // pred_fallthru
      _
    // Predicated region
    $region14: #{transformer_decoder_layer.15} parent=1 // pred_check
      _
    $region15: #{transformer_decoder_layer.15} parent=1 // pred_check_branch
      %21 = sbr.rel (0) target = $region17
    $region16: #{transformer_decoder_layer.15} parent=1 // pred_region
      _
    $region17: #{transformer_decoder_layer.15} parent=1 // pred_fallthru
      _
    // Predicated region
    $region18: #{transformer_decoder_layer.15} parent=1 // pred_check
      _
    $region19: #{transformer_decoder_layer.15} parent=1 // pred_check_branch
      %23 = sbr.rel (0) target = $region21
    $region20: #{transformer_decoder_layer.15} parent=1 // pred_region
      _
    $region21: #{transformer_decoder_layer.15} parent=1 // pred_fallthru
      _
    // Predicated region
    $region22: #{transformer_decoder_layer.15} parent=1 // pred_check
      _
    $region23: #{transformer_decoder_layer.15} parent=1 // pred_check_branch
      %25 = sbr.rel (0) target = $region25
    $region24: #{transformer_decoder_layer.15} parent=1 // pred_region
      _
    $region25: #{transformer_decoder_layer.15} parent=1 // pred_fallthru
      _
    // Predicated region
    $region26: #{transformer_decoder_layer.15} parent=1 // pred_check
      _
    $region27: #{transformer_decoder_layer.15} parent=1 // pred_check_branch
      %27 = sbr.rel (0) target = $region29
    $region28: #{transformer_decoder_layer.15} parent=1 // pred_region
      _
    $region29: #{transformer_decoder_layer.15} parent=1 // pred_fallthru
      _
    // Predicated region
    $region30: #{transformer_decoder_layer.15} parent=1 // pred_check
      _
    $region31: #{transformer_decoder_layer.15} parent=1 // pred_check_branch
      %29 = sbr.rel (0) target = $region33
    $region32: #{transformer_decoder_layer.15} parent=1 // pred_region
      _
    $region33: #{transformer_decoder_layer.15} parent=1 // pred_fallthru
      _
    %v31 = vld [vmem:[%s0] sm:$0xff]
    %v32 = vld [vmem:[%s0 + $0x8] sm:$0xff]
    %v33 = vpack.c.bf16 %v32, %v31
    %v34 = vld [vmem:[%s1] sm:$0xff]
    %v35 = vld [vmem:[%s1 + $0x8] sm:$0xff]
    %v36 = vld [vmem:[%s1 + $0x10] sm:$0xff]
    %v37 = vld [vmem:[%s1 + $0x18] sm:$0xff]
    %v38 = vpack.c.bf16 %v35, %v34
    %v39 = vpack.c.bf16 %v37, %v36
    %v40 = vld [vmem:[%s2] sm:$0x1]
    %v42 = vperm.slane %v40, 0
    %vm44 = vcmask 261120
    %v46 = vsel %vm44, %v33, 0
    %48 = vmatpush.bf16.msra.mxu0 0
    %49 = vmatpush.bf16.msra.mxu0 0
    %50 = vmatpush.bf16.msra.mxu0 0
    %51 = vmatpush.bf16.msra.mxu0 0
    %52 = vmatpush.bf16.msra.mxu0 0
    %53 = vmatpush.bf16.msra.mxu0 0
    %54 = vmatpush.bf16.msra.mxu0 %v39
    %55 = vmatpush.bf16.msra.mxu0 %v38
    %56 = vmatmul.bf16.gmra.mxu0 %v46
    %v57 = vpop.f32.mrf.mxu0
    %v58 = vadd.f32 %v42, %v57
    %v59 = vpop.f32.mrf.mxu0
    %v60 = vadd.f32 %v42, %v59
    %61 = vdwg.mxu0
    %v62 = vmul.f32 %v58, %v58
    %v63 = vmul.f32 %v60, %v60
    %v64 = vmul.f32 %v58, %v62
    %v65 = vmul.f32 %v60, %v63
    %v66 = vmul.f32 %v64, 0.044715
    %v67 = vmul.f32 %v65, 0.044715
    %v68 = vadd.f32 %v58, %v66
    %v69 = vadd.f32 %v60, %v67
    %v70 = vmul.f32 %v68, 0.7978846
    %v71 = vmul.f32 %v69, 0.7978846
    %v72 = vtanh.pop %v70
    %v73 = vtanh.pop %v71
    %v74 = vadd.f32 %v72, 1.0
    %v75 = vadd.f32 %v73, 1.0
    %v76 = vmul.f32 %v74, 0.5
    %v77 = vmul.f32 %v75, 0.5
    %v78 = vmul.f32 %v58, %v76
    %v79 = vmul.f32 %v60, %v77
    %v80 = vpack.c.bf16 %v79, %v78
    %v81 = vld [vmem:[%s3] sm:$0xff]
    %v82 = vld [vmem:[%s3 + $0x8] sm:$0xff]
    %v83 = vld [vmem:[%s3 + $0x10] sm:$0xff]
    %v84 = vld [vmem:[%s3 + $0x18] sm:$0xff]
    %v85 = vld [vmem:[%s3 + $0x20] sm:$0xff]
    %v86 = vld [vmem:[%s3 + $0x28] sm:$0xff]
    %v87 = vld [vmem:[%s3 + $0x30] sm:$0xff]
    %v88 = vld [vmem:[%s3 + $0x38] sm:$0xff]
    %v89 = vpack.c.bf16 %v82, %v81
    %v90 = vpack.c.bf16 %v84, %v83
    %v91 = vpack.c.bf16 %v86, %v85
    %v92 = vpack.c.bf16 %v88, %v87
    %v93 = vld [vmem:[%s4] sm:$0x1]
    %v95 = vperm.slane %v93, 0
    %vm97 = vcmask 523264
    %v99 = vsel %vm97, %v80, 0
    %101 = vmatpush.bf16.msra.mxu0 0
    %102 = vmatpush.bf16.msra.mxu0 0
    %103 = vmatpush.bf16.msra.mxu0 0
    %104 = vmatpush.bf16.msra.mxu0 0
    %105 = vmatpush.bf16.msra.mxu0 %v92
    %106 = vmatpush.bf16.msra.mxu0 %v91
    %107 = vmatpush.bf16.msra.mxu0 %v90
    %108 = vmatpush.bf16.msra.mxu0 %v89
    %109 = vmatmul.bf16.gmra.mxu0 %v99
    %v110 = vpop.f32.mrf.mxu0
    %v111 = vadd.f32 %v95, %v110
    %v112 = vpop.f32.mrf.mxu0
    %v113 = vadd.f32 %v95, %v112
    %114 = vdwg.mxu0
    %v115 = vld [vmem:[%s5] sm:$0xff]
    %v116 = vld [vmem:[%s5 + $0x8] sm:$0xff]
    %v117 = vadd.f32 %v111, %v115
    %v118 = vadd.f32 %v113, %v116
    %v119 = vsel %vm44, %v117, 0.0
    %120 = vadd.xlane.f32.xlu0 %v119
    %v121 = vpop.xlane.xlu0 %120
    %v122 = vsel %vm44, %v118, 0.0
    %123 = vadd.xlane.f32.xlu0 %v122
    %v124 = vpop.xlane.xlu0 %123
    %v125 = vrcp.pop 32.0
    %v126 = vmul.f32 32.0, %v125
    %v127 = vsub.f32 1.0, %v126
    %v128 = vmul.f32 %v125, %v127
    %v129 = vadd.f32 %v125, %v128
    %vm130 = vweird.f32 %v125
    %v131 = vsel %vm130, %v125, %v129
    %v132 = vmul.f32 %v121, %v131
    %v133 = vmul.f32 %v124, %v131
    %v134 = vsub.f32 %v117, %v132
    %v135 = vsub.f32 %v118, %v133
    %v136 = vmul.f32 %v134, %v134
    %v137 = vmul.f32 %v135, %v135
    %v138 = vsel %vm44, %v136, 0.0
    %139 = vadd.xlane.f32.xlu0 %v138
    %v140 = vpop.xlane.xlu0 %139
    %v141 = vsel %vm44, %v137, 0.0
    %142 = vadd.xlane.f32.xlu0 %v141
    %v143 = vpop.xlane.xlu0 %142
    %v144 = vmul.f32 %v140, %v131
    %v145 = vmul.f32 %v143, %v131
    %v146 = vadd.f32 %v144, 1e-06
    %v147 = vadd.f32 %v145, 1e-06
    %v148 = vrsqrt.pop %v146
    %v149 = vmul.f32 %v148, %v146
    %v150 = vmul.f32 %v149, %v148
    %v151 = vmul.f32 0.5, %v150
    %v152 = vsub.f32 1.5, %v151
    %v153 = vmul.f32 %v148, %v152
    %vm154 = vweird.f32 %v146
    %vm155 = vweird.f32 %v148
    %vm156 = vmor %vm154, %vm155
    %v157 = vsel %vm156, %v148, %v153
    %v158 = vrsqrt.pop %v147
    %v159 = vmul.f32 %v158, %v147
    %v160 = vmul.f32 %v159, %v158
    %v161 = vmul.f32 0.5, %v160
    %v162 = vsub.f32 1.5, %v161
    %v163 = vmul.f32 %v158, %v162
    %vm164 = vweird.f32 %v147
    %vm165 = vweird.f32 %v158
    %vm166 = vmor %vm164, %vm165
    %v167 = vsel %vm166, %v158, %v163
    %v168 = vmul.f32 %v134, %v157
    %v169 = vmul.f32 %v135, %v167
    %v170 = vld [vmem:[%s6] sm:$0x1]
    %v172 = vperm.slane %v170, 0
    %v174 = vmul.f32 %v168, %v172
    %v175 = vmul.f32 %v169, %v172
    %v176 = vld [vmem:[%s7] sm:$0x1]
    %v178 = vperm.slane %v176, 0
    %v180 = vadd.f32 %v174, %v178
    %v181 = vadd.f32 %v175, %v178
    %182 = vst.msk [vmem:[#allocation2] sm:$0xff] %vm44, %v180
    %183 = vst.msk [vmem:[#allocation2 + $0x8] sm:$0xff] %vm44, %v181
    // Predicated region
    $region34: #{transformer_decoder_layer.15} parent=1 // pred_check
      _
    $region35: #{transformer_decoder_layer.15} parent=1 // pred_check_branch
      %185 = sbr.rel (0) target = $region37
    $region36: #{transformer_decoder_layer.15} parent=1 // pred_region
      %187 = vsyncadd [#allocation3], 0
      %s188 = sshll.u32 [#allocation2], 4
      %s189 = int_to_ptr.vmem [resolvable:$true] %s188
      %s190 = sshll.u32 %s8, 4
      %s191 = int_to_ptr.hbm [resolvable:$true] %s190
      %196 = dma.vmem_to_hbm [thread:$0]  %s189, 256, %s191, [#allocation3], 128, 128, 8
    $region37: #{transformer_decoder_layer.15} parent=1 // pred_fallthru
      _
    // Predicated region
    $region38: #{transformer_decoder_layer.15} parent=1 // pred_check
      _
    $region39: #{transformer_decoder_layer.15} parent=1 // pred_check_branch
      %198 = sbr.rel (0) target = $region41
    $region40: #{transformer_decoder_layer.15} parent=1 // pred_region
      %200 = dma.done [#allocation3], 256
    $region41: #{transformer_decoder_layer.15} parent=1 // pred_fallthru
      _
    %201 = vsyncpa [#allocation3], 1

</llo_original>
